<compile_context>
chip_gen: v5e
topology: v5e:2x2
jax: 0.10.0
libtpu: 0.0.40
codegen_flags: <defaults>
</compile_context>

<pallas_src>
import numpy as np
import jax
import jax.numpy as jnp
from jax import lax
from jax.experimental import pallas as pl
from jax.experimental.pallas import tpu as pltpu

K1, K2, K3 = 5, 5, 9   # conv kernel sizes
S3 = 3                 # conv3 stride
_NB_MAX = 256          # samples per grid step: multiple of 8, one full MXU row
                       # tile on v6e/v7x (two on v5e); >=2 grid steps for big N.


# ------------------------------ fused kernel ---------------------------------
def _remora_signal_cnn_kernel(x_ref, a1_ref, b1_ref, a2_ref, b2_ref,
                              a3_ref, b3_ref, o_ref):
    """Whole network: three lane-dense f32 matmuls + bias + SiLU, one store."""
    def silu(v):
        return v * jax.nn.sigmoid(v)

    y1 = silu(jnp.dot(x_ref[...], a1_ref[...],
                      preferred_element_type=jnp.float32) + b1_ref[...])
    y2 = silu(jnp.dot(y1, a2_ref[...],
                      preferred_element_type=jnp.float32) + b2_ref[...])
    o_ref[...] = silu(jnp.dot(y2, a3_ref[...],
                              preferred_element_type=jnp.float32) + b3_ref[...])


# -------------------------------- wrapper -------------------------------------
def _fold_bn(w_kio, b, gamma, beta, mean, var, eps=1e-5):
    """Fold eval-mode BatchNorm1d into the preceding conv's weight / bias."""
    scale = gamma / jnp.sqrt(var + eps)                      # (Cout,)
    return w_kio * scale[None, None, :], (b - mean) * scale + beta


def _unroll_conv(w_kio, b_o, t_in, stride):
    """Unroll a VALID Conv1d into a dense matrix acting on the time-major,
    channel-minor flattening of its input:
        flatten(conv1d(x, w, stride) + b) == flatten(x) @ A + b_flat
    Returns A: (t_in*Cin, t_out*Cout), b_flat: (1, t_out*Cout), t_out."""
    k, cin, cout = w_kio.shape
    t_out = (t_in - k) // stride + 1
    # sel[kk, t, l] = 1 iff input position l feeds tap kk of output step t.
    taps = stride * np.arange(t_out)[None, :, None] + np.arange(k)[:, None, None]
    sel = (np.arange(t_in)[None, None, :] == taps).astype(np.float32)
    a = jnp.einsum("ktl,kio->lito", jnp.asarray(sel), w_kio)
    a = a.reshape(t_in * cin, t_out * cout)
    b_flat = jnp.tile(b_o, t_out).reshape(1, t_out * cout)
    return a, b_flat, t_out


def remora_signal_cnn_forward(x_ncl, params, *, block_n=None):
    """x_ncl: (N, 1, L) in PyTorch Conv1d layout. Returns (N, size, T_out)."""
    N, cin, L = x_ncl.shape
    assert cin == 1, "RemoraSignalCNN expects a single input channel"

    w1, b1 = _fold_bn(params["w1"], params["b1"], *params["bn1"])
    w2, b2 = _fold_bn(params["w2"], params["b2"], *params["bn2"])
    w3, b3 = _fold_bn(params["w3"], params["b3"], *params["bn3"])
    C1, C2, C3 = w1.shape[2], w2.shape[2], w3.shape[2]

    a1, b1f, T1 = _unroll_conv(w1, b1, L, 1)     # ( L ,   T1*C1)
    a2, b2f, T2 = _unroll_conv(w2, b2, T1, 1)    # (T1*C1, T2*C2)
    a3, b3f, T3 = _unroll_conv(w3, b3, T2, S3)   # (T2*C2, T3*C3)

    # Static geometry / feasibility checks (VMEM refs have no runtime bounds).
    assert K3 + S3 * (T3 - 1) <= T2
    # Dense unroll is only sensible for short Remora chunks (A2/A3 ~ O(L^2)).
    # TODO(synk): blocked in-kernel im2col over the time axis for long signals.
    assert a2.size + a3.size <= (4 << 20), "signal too long for dense conv unroll"

    nb = block_n or (N if N <= _NB_MAX else _NB_MAX)
    n_pad = pl.cdiv(N, nb) * nb
    x2d = x_ncl.reshape(N, L).astype(jnp.float32)   # drop size-1 channel (free)
    if n_pad != N:
        x2d = jnp.pad(x2d, ((0, n_pad - N), (0, 0)))

    out_flat = pl.pallas_call(
        _remora_signal_cnn_kernel,
        out_shape=jax.ShapeDtypeStruct((n_pad, T3 * C3), jnp.float32),
        grid=(n_pad // nb,),
        in_specs=[
            pl.BlockSpec((nb, L), lambda i: (i, 0)),              # signal block
            pl.BlockSpec((L, T1 * C1), lambda i: (0, 0)),         # conv1 unrolled
            pl.BlockSpec((1, T1 * C1), lambda i: (0, 0)),
            pl.BlockSpec((T1 * C1, T2 * C2), lambda i: (0, 0)),   # conv2 unrolled
            pl.BlockSpec((1, T2 * C2), lambda i: (0, 0)),
            pl.BlockSpec((T2 * C2, T3 * C3), lambda i: (0, 0)),   # conv3 unrolled
            pl.BlockSpec((1, T3 * C3), lambda i: (0, 0)),
        ],
        out_specs=pl.BlockSpec((nb, T3 * C3), lambda i: (i, 0)),  # lane-dense slab
        compiler_params=pltpu.CompilerParams(
            dimension_semantics=("parallel",)),
    )(x2d, a1, b1f, a2, b2f, a3, b3f)

    out = out_flat[:N].reshape(N, T3, C3)            # flat slab -> (N, T3, C3)
    return jnp.transpose(out, (0, 2, 1))             # (N, size, T_out)


# --------------------------- pure-JAX reference --------------------------------
def reference_forward(x_ncl, params):
    """XLA reference matching the PyTorch module in eval mode."""
    def conv(x, w_kio, b, stride):
        w_oik = jnp.transpose(w_kio, (2, 1, 0))              # (Cout, Cin, K)
        y = lax.conv_general_dilated(
            x, w_oik, window_strides=(stride,), padding="VALID",
            dimension_numbers=("NCH", "OIH", "NCH"))
        return y + b[None, :, None]

    def bn(x, gamma, beta, mean, var, eps=1e-5):
        inv = gamma / jnp.sqrt(var + eps)
        return (x - mean[None, :, None]) * inv[None, :, None] + beta[None, :, None]

    def silu(v):
        return v * jax.nn.sigmoid(v)

    y = silu(bn(conv(x_ncl, params["w1"], params["b1"], 1), *params["bn1"]))
    y = silu(bn(conv(y, params["w2"], params["b2"], 1), *params["bn2"]))   # dropout = id
    y = silu(bn(conv(y, params["w3"], params["b3"], 3), *params["bn3"]))   # dropout = id
    return y


def make_params(key, size):
    ks = jax.random.split(key, 9)

    def bn_stats(k, c):
        k0, k1, k2, k3 = jax.random.split(k, 4)
        gamma = 1.0 + 0.1 * jax.random.normal(k0, (c,), jnp.float32)
        beta = 0.1 * jax.random.normal(k1, (c,), jnp.float32)
        mean = 0.1 * jax.random.normal(k2, (c,), jnp.float32)
        var = 1.0 + 0.2 * jnp.abs(jax.random.normal(k3, (c,), jnp.float32))
        return (gamma, beta, mean, var)

    # conv weights stored (K, Cin, Cout); PyTorch's (Cout, Cin, K) is transpose(2,1,0).
    return {
        "w1": 0.5 * jax.random.normal(ks[0], (K1, 1, 4), jnp.float32),
        "b1": 0.1 * jax.random.normal(ks[1], (4,), jnp.float32),
        "bn1": bn_stats(ks[2], 4),
        "w2": 0.2 * jax.random.normal(ks[3], (K2, 4, 16), jnp.float32),
        "b2": 0.1 * jax.random.normal(ks[4], (16,), jnp.float32),
        "bn2": bn_stats(ks[5], 16),
        "w3": 0.1 * jax.random.normal(ks[6], (K3, 16, size), jnp.float32),
        "b3": 0.1 * jax.random.normal(ks[7], (size,), jnp.float32),
        "bn3": bn_stats(ks[8], size),
    }


if __name__ == "__main__":
    N, C_IN, L, SIZE = 2, 1, 64, 32        # Conv1d(1, 4, 5) fixes C_IN = 1
    key = jax.random.PRNGKey(0)
    kx, kp = jax.random.split(key)
    x = jax.random.normal(kx, (N, C_IN, L), jnp.float32)
    params = make_params(kp, SIZE)

    out = jax.jit(remora_signal_cnn_forward)(x, params)
    jax.block_until_ready(out)

    T_out = ((L - K1 - K2 + 2) - K3) // S3 + 1               # = 16 for L = 64
    assert out.shape == (N, SIZE, T_out), out.shape

    ref = reference_forward(x, params)
    max_err = float(jnp.max(jnp.abs(out - ref)))
    # All operands are f32; the tolerance only covers whichever default f32
    # matmul pass policy the MXU / XLA conv use (typically ~1e-5 in practice).
    assert max_err < 2e-2, f"max |err| = {max_err}"
    print("KERNEL_OK")
</pallas_src>

<mosaic_0001>
module attributes {stable_mosaic.version = 11 : i64} {
  func.func @_remora_signal_cnn_kernel(%arg0: i32, %arg1: memref<2x64xf32, #tpu.memory_space<vmem>>, %arg2: memref<64x240xf32, #tpu.memory_space<vmem>>, %arg3: memref<1x240xf32, #tpu.memory_space<vmem>>, %arg4: memref<240x896xf32, #tpu.memory_space<vmem>>, %arg5: memref<1x896xf32, #tpu.memory_space<vmem>>, %arg6: memref<896x512xf32, #tpu.memory_space<vmem>>, %arg7: memref<1x512xf32, #tpu.memory_space<vmem>>, %arg8: memref<2x512xf32, #tpu.memory_space<vmem>>) attributes {dimension_semantics = [#tpu.dimension_semantics<parallel>], iteration_bounds = array<i64: 1>, scalar_prefetch = 0 : i64, scratch_operands = 0 : i64, tpu.core_type = #tpu.core_type<tc>, window_params = [{transform_indices = @transform_0, window_bounds = array<i64: 2, 64>}, {pipeline_mode = #tpu.pipeline_mode<synchronous>, transform_indices = @transform_1, window_bounds = array<i64: 64, 240>}, {pipeline_mode = #tpu.pipeline_mode<synchronous>, transform_indices = @transform_2, window_bounds = array<i64: 1, 240>}, {pipeline_mode = #tpu.pipeline_mode<synchronous>, transform_indices = @transform_3, window_bounds = array<i64: 240, 896>}, {pipeline_mode = #tpu.pipeline_mode<synchronous>, transform_indices = @transform_4, window_bounds = array<i64: 1, 896>}, {pipeline_mode = #tpu.pipeline_mode<synchronous>, transform_indices = @transform_5, window_bounds = array<i64: 896, 512>}, {pipeline_mode = #tpu.pipeline_mode<synchronous>, transform_indices = @transform_6, window_bounds = array<i64: 1, 512>}, {transform_indices = @transform_7, window_bounds = array<i64: 2, 512>}]} {
    %c0 = arith.constant 0 : index
    %c0_0 = arith.constant 0 : index
    %0 = vector.load %arg1[%c0, %c0_0] : memref<2x64xf32, #tpu.memory_space<vmem>>, vector<2x64xf32>
    %c0_1 = arith.constant 0 : index
    %c0_2 = arith.constant 0 : index
    %1 = vector.load %arg2[%c0_1, %c0_2] : memref<64x240xf32, #tpu.memory_space<vmem>>, vector<64x240xf32>
    %cst = arith.constant dense<0.000000e+00> : vector<2x240xf32>
    %2 = tpu.matmul %0, %1, %cst {dimension_numbers = #tpu.dot_dimension_numbers<[1], [0], [0], [1], [0, 0, 1, 1], [], []>} : vector<2x64xf32>, vector<64x240xf32>, vector<2x240xf32> -> vector<2x240xf32>
    %c0_3 = arith.constant 0 : index
    %c0_4 = arith.constant 0 : index
    %3 = vector.load %arg3[%c0_3, %c0_4] : memref<1x240xf32, #tpu.memory_space<vmem>>, vector<1x240xf32>
    %4 = vector.broadcast %3 : vector<1x240xf32> to vector<2x240xf32>
    %5 = arith.addf %2, %4 : vector<2x240xf32>
    %6 = arith.negf %5 : vector<2x240xf32>
    %7 = math.exp %6 : vector<2x240xf32>
    %cst_5 = arith.constant 1.000000e+00 : f32
    %8 = vector.broadcast %cst_5 : f32 to vector<2x240xf32>
    %9 = arith.addf %8, %7 : vector<2x240xf32>
    %10 = arith.divf %8, %9 : vector<2x240xf32>
    %11 = arith.mulf %5, %10 : vector<2x240xf32>
    %c0_6 = arith.constant 0 : index
    %c0_7 = arith.constant 0 : index
    %12 = vector.load %arg4[%c0_6, %c0_7] : memref<240x896xf32, #tpu.memory_space<vmem>>, vector<240x896xf32>
    %cst_8 = arith.constant dense<0.000000e+00> : vector<2x896xf32>
    %13 = tpu.matmul %11, %12, %cst_8 {dimension_numbers = #tpu.dot_dimension_numbers<[1], [0], [0], [1], [0, 0, 1, 1], [], []>} : vector<2x240xf32>, vector<240x896xf32>, vector<2x896xf32> -> vector<2x896xf32>
    %c0_9 = arith.constant 0 : index
    %c0_10 = arith.constant 0 : index
    %14 = vector.load %arg5[%c0_9, %c0_10] : memref<1x896xf32, #tpu.memory_space<vmem>>, vector<1x896xf32>
    %15 = vector.broadcast %14 : vector<1x896xf32> to vector<2x896xf32>
    %16 = arith.addf %13, %15 : vector<2x896xf32>
    %17 = arith.negf %16 : vector<2x896xf32>
    %18 = math.exp %17 : vector<2x896xf32>
    %cst_11 = arith.constant 1.000000e+00 : f32
    %19 = vector.broadcast %cst_11 : f32 to vector<2x896xf32>
    %20 = arith.addf %19, %18 : vector<2x896xf32>
    %21 = arith.divf %19, %20 : vector<2x896xf32>
    %22 = arith.mulf %16, %21 : vector<2x896xf32>
    %c0_12 = arith.constant 0 : index
    %c0_13 = arith.constant 0 : index
    %23 = vector.load %arg6[%c0_12, %c0_13] : memref<896x512xf32, #tpu.memory_space<vmem>>, vector<896x512xf32>
    %cst_14 = arith.constant dense<0.000000e+00> : vector<2x512xf32>
    %24 = tpu.matmul %22, %23, %cst_14 {dimension_numbers = #tpu.dot_dimension_numbers<[1], [0], [0], [1], [0, 0, 1, 1], [], []>} : vector<2x896xf32>, vector<896x512xf32>, vector<2x512xf32> -> vector<2x512xf32>
    %c0_15 = arith.constant 0 : index
    %c0_16 = arith.constant 0 : index
    %25 = vector.load %arg7[%c0_15, %c0_16] : memref<1x512xf32, #tpu.memory_space<vmem>>, vector<1x512xf32>
    %26 = vector.broadcast %25 : vector<1x512xf32> to vector<2x512xf32>
    %27 = arith.addf %24, %26 : vector<2x512xf32>
    %28 = arith.negf %27 : vector<2x512xf32>
    %29 = math.exp %28 : vector<2x512xf32>
    %cst_17 = arith.constant 1.000000e+00 : f32
    %30 = vector.broadcast %cst_17 : f32 to vector<2x512xf32>
    %31 = arith.addf %30, %29 : vector<2x512xf32>
    %32 = arith.divf %30, %31 : vector<2x512xf32>
    %33 = arith.mulf %27, %32 : vector<2x512xf32>
    %c0_18 = arith.constant 0 : index
    %c0_19 = arith.constant 0 : index
    %34 = vector.load %arg8[%c0_18, %c0_19] : memref<2x512xf32, #tpu.memory_space<vmem>>, vector<2x512xf32>
    tpu.vector_store %arg8[%c0_18, %c0_19], %33 {strides = array<i32>} : memref<2x512xf32, #tpu.memory_space<vmem>>, vector<2x512xf32>,
    return
  }
  func.func @transform_0(%arg0: i32) -> (i32, i32) {
    %c0_i32 = arith.constant 0 : i32
    %c0_i32_0 = arith.constant 0 : i32
    return %arg0, %c0_i32 : i32, i32
  }
  func.func @transform_1(%arg0: i32) -> (i32, i32) {
    %c0_i32 = arith.constant 0 : i32
    %c0_i32_0 = arith.constant 0 : i32
    %c0_i32_1 = arith.constant 0 : i32
    return %c0_i32, %c0_i32_0 : i32, i32
  }
  func.func @transform_2(%arg0: i32) -> (i32, i32) {
    %c0_i32 = arith.constant 0 : i32
    %c0_i32_0 = arith.constant 0 : i32
    %c0_i32_1 = arith.constant 0 : i32
    return %c0_i32, %c0_i32_0 : i32, i32
  }
  func.func @transform_3(%arg0: i32) -> (i32, i32) {
    %c0_i32 = arith.constant 0 : i32
    %c0_i32_0 = arith.constant 0 : i32
    %c0_i32_1 = arith.constant 0 : i32
    return %c0_i32, %c0_i32_0 : i32, i32
  }
  func.func @transform_4(%arg0: i32) -> (i32, i32) {
    %c0_i32 = arith.constant 0 : i32
    %c0_i32_0 = arith.constant 0 : i32
    %c0_i32_1 = arith.constant 0 : i32
    return %c0_i32, %c0_i32_0 : i32, i32
  }
  func.func @transform_5(%arg0: i32) -> (i32, i32) {
    %c0_i32 = arith.constant 0 : i32
    %c0_i32_0 = arith.constant 0 : i32
    %c0_i32_1 = arith.constant 0 : i32
    return %c0_i32, %c0_i32_0 : i32, i32
  }
  func.func @transform_6(%arg0: i32) -> (i32, i32) {
    %c0_i32 = arith.constant 0 : i32
    %c0_i32_0 = arith.constant 0 : i32
    %c0_i32_1 = arith.constant 0 : i32
    return %c0_i32, %c0_i32_0 : i32, i32
  }
  func.func @transform_7(%arg0: i32) -> (i32, i32) {
    %c0_i32 = arith.constant 0 : i32
    %c0_i32_0 = arith.constant 0 : i32
    return %arg0, %c0_i32 : i32, i32
  }
}

</mosaic_0001>

<llo_original>
// kernel: tile.18
$region0: #{tile.18}
  #allocation0 [shape = 's32[1]{0}', space=sflag, size = 0x4, scoped, tag = 'scoped memory for tile.18']
  %s0 = inlined_call_operand.vmem [shape: f32[4], index: 0, kind: input, shape index: {}]
  %s1 = inlined_call_operand.vmem [shape: f32[60,4], index: 1, kind: output, shape index: {}]
  // Predicated region
  $region2: #{tile.18} parent=0 // pred_check
    _
  $region3: #{tile.18} parent=0 // pred_check_branch
    %3 = sbr.rel (0) target = $region5
  $region4: #{tile.18} parent=0 // pred_region
    _
  $region5: #{tile.18} parent=0 // pred_fallthru
    _
  %v4 = vld [vmem:[%s0] ss:$0 sm:$0xff]
  %5 = vst [vmem:[%s1] sm:$0xff] %v4
  %s6 = scalar_lea.vmem %s1, 8
  %7 = vst [vmem:[%s6] sm:$0xff] %v4
  %s8 = scalar_lea.vmem %s1, 16
  %9 = vst [vmem:[%s8] sm:$0xff] %v4
  %s10 = scalar_lea.vmem %s1, 24
  %11 = vst [vmem:[%s10] sm:$0xff] %v4
  %s12 = scalar_lea.vmem %s1, 32
  %13 = vst [vmem:[%s12] sm:$0xff] %v4
  %s14 = scalar_lea.vmem %s1, 40
  %15 = vst [vmem:[%s14] sm:$0xff] %v4
  %s16 = scalar_lea.vmem %s1, 48
  %17 = vst [vmem:[%s16] sm:$0xff] %v4
  %s18 = scalar_lea.vmem %s1, 56
  %19 = vst [vmem:[%s18] sm:$0xff] %v4

// kernel: tile.19
$region0: #{tile.19}
  %s0 = inlined_call_operand.vmem [shape: f32[60,4], index: 0, kind: input, shape index: {}]
  %s1 = inlined_call_operand.vmem [shape: f32[1,240], index: 1, kind: output, shape index: {}]
  $region1: #{tile.19} parent=0
    #allocation0 [shape = 'u8[8192]{0}', space=vmem, size = 0x2000, scoped, tag = 'scoped mem for output reshape']
    %v2 = vld [vmem:[%s0] sm:$0x1]
    %s3 = scalar_lea.vmem %s0, 31
    %v4 = vld [vmem:[%s3] sm:$0x2]
    %vm5 = vcmask 1041409
    %v6 = vsel %vm5, %v4, %v2
    %vm7 = vcmask 31744
    %8 = vst.msk [vmem:[#allocation0] ss:$8 sm:$0x3] %vm7, %v6
    %s9 = scalar_lea.vmem %s0, 31
    %v10 = vld [vmem:[%s9] sm:$0x1]
    %11 = vrot.lane.b32.xlu0 %v10, 124
    %v12 = vpop.permute.xlu0 %11
    %vm13 = vcmask 1048544
    %14 = vst.msk [vmem:[#allocation0] sm:$0x1] %vm13, %v12
    %s15 = scalar_lea.vmem %s0, 30
    %v16 = vld [vmem:[%s15] sm:$0x1]
    %17 = vrot.lane.b32.xlu0 %v16, 120
    %v18 = vpop.permute.xlu0 %17
    %vm19 = vcmask 1015744
    %20 = vst.msk [vmem:[#allocation0] sm:$0x1] %vm19, %v18
    %s21 = scalar_lea.vmem %s0, 29
    %v22 = vld [vmem:[%s21] sm:$0x1]
    %23 = vrot.lane.b32.xlu0 %v22, 116
    %v24 = vpop.permute.xlu0 %23
    %vm25 = vcmask 982944
    %26 = vst.msk [vmem:[#allocation0] sm:$0x1] %vm25, %v24
    %s27 = scalar_lea.vmem %s0, 28
    %v28 = vld [vmem:[%s27] sm:$0x1]
    %29 = vrot.lane.b32.xlu0 %v28, 112
    %v30 = vpop.permute.xlu0 %29
    %vm31 = vcmask 950144
    %32 = vst.msk [vmem:[#allocation0] sm:$0x1] %vm31, %v30
    %s33 = scalar_lea.vmem %s0, 27
    %v34 = vld [vmem:[%s33] sm:$0x1]
    %s35 = scalar_lea.vmem %s0, 58
    %v36 = vld [vmem:[%s35] sm:$0x2]
    %vm37 = vcmask 1041409
    %v38 = vsel %vm37, %v36, %v34
    %39 = vrot.lane.b32.xlu0 %v38, 108
    %v40 = vpop.permute.xlu0 %39
    %vm41 = vcmask 917344
    %42 = vst.msk [vmem:[#allocation0] ss:$8 sm:$0x3] %vm41, %v40
    %s43 = scalar_lea.vmem %s0, 26
    %v44 = vld [vmem:[%s43] sm:$0x1]
    %s45 = scalar_lea.vmem %s0, 57
    %v46 = vld [vmem:[%s45] sm:$0x2]
    %vm47 = vcmask 1041409
    %v48 = vsel %vm47, %v46, %v44
    %49 = vrot.lane.b32.xlu0 %v48, 104
    %v50 = vpop.permute.xlu0 %49
    %vm51 = vcmask 884544
    %52 = vst.msk [vmem:[#allocation0] ss:$8 sm:$0x3] %vm51, %v50
    %s53 = scalar_lea.vmem %s0, 25
    %v54 = vld [vmem:[%s53] sm:$0x1]
    %s55 = scalar_lea.vmem %s0, 56
    %v56 = vld [vmem:[%s55] sm:$0x2]
    %vm57 = vcmask 1041409
    %v58 = vsel %vm57, %v56, %v54
    %59 = vrot.lane.b32.xlu0 %v58, 100
    %v60 = vpop.permute.xlu0 %59
    %vm61 = vcmask 851744
    %62 = vst.msk [vmem:[#allocation0] ss:$8 sm:$0x3] %vm61, %v60
    %s63 = scalar_lea.vmem %s0, 24
    %v64 = vld [vmem:[%s63] sm:$0x1]
    %s65 = scalar_lea.vmem %s0, 55
    %v66 = vld [vmem:[%s65] sm:$0x2]
    %vm67 = vcmask 1041409
    %v68 = vsel %vm67, %v66, %v64
    %69 = vrot.lane.b32.xlu0 %v68, 96
    %v70 = vpop.permute.xlu0 %69
    %vm71 = vcmask 818944
    %72 = vst.msk [vmem:[#allocation0] ss:$8 sm:$0x3] %vm71, %v70
    %s73 = scalar_lea.vmem %s0, 23
    %v74 = vld [vmem:[%s73] sm:$0x1]
    %s75 = scalar_lea.vmem %s0, 54
    %v76 = vld [vmem:[%s75] sm:$0x2]
    %vm77 = vcmask 1041409
    %v78 = vsel %vm77, %v76, %v74
    %79 = vrot.lane.b32.xlu0 %v78, 92
    %v80 = vpop.permute.xlu0 %79
    %vm81 = vcmask 786144
    %82 = vst.msk [vmem:[#allocation0] ss:$8 sm:$0x3] %vm81, %v80
    %s83 = scalar_lea.vmem %s0, 22
    %v84 = vld [vmem:[%s83] sm:$0x1]
    %s85 = scalar_lea.vmem %s0, 53
    %v86 = vld [vmem:[%s85] sm:$0x2]
    %vm87 = vcmask 1041409
    %v88 = vsel %vm87, %v86, %v84
    %89 = vrot.lane.b32.xlu0 %v88, 88
    %v90 = vpop.permute.xlu0 %89
    %vm91 = vcmask 753344
    %92 = vst.msk [vmem:[#allocation0] ss:$8 sm:$0x3] %vm91, %v90
    %s93 = scalar_lea.vmem %s0, 21
    %v94 = vld [vmem:[%s93] sm:$0x1]
    %s95 = scalar_lea.vmem %s0, 52
    %v96 = vld [vmem:[%s95] sm:$0x2]
    %vm97 = vcmask 1041409
    %v98 = vsel %vm97, %v96, %v94
    %99 = vrot.lane.b32.xlu0 %v98, 84
    %v100 = vpop.permute.xlu0 %99
    %vm101 = vcmask 720544
    %102 = vst.msk [vmem:[#allocation0] ss:$8 sm:$0x3] %vm101, %v100
    %s103 = scalar_lea.vmem %s0, 20
    %v104 = vld [vmem:[%s103] sm:$0x1]
    %s105 = scalar_lea.vmem %s0, 51
    %v106 = vld [vmem:[%s105] sm:$0x2]
    %vm107 = vcmask 1041409
    %v108 = vsel %vm107, %v106, %v104
    %109 = vrot.lane.b32.xlu0 %v108, 80
    %v110 = vpop.permute.xlu0 %109
    %vm111 = vcmask 687744
    %112 = vst.msk [vmem:[#allocation0] ss:$8 sm:$0x3] %vm111, %v110
    %s113 = scalar_lea.vmem %s0, 19
    %v114 = vld [vmem:[%s113] sm:$0x1]
    %s115 = scalar_lea.vmem %s0, 50
    %v116 = vld [vmem:[%s115] sm:$0x2]
    %vm117 = vcmask 1041409
    %v118 = vsel %vm117, %v116, %v114
    %119 = vrot.lane.b32.xlu0 %v118, 76
    %v120 = vpop.permute.xlu0 %119
    %vm121 = vcmask 654944
    %122 = vst.msk [vmem:[#allocation0] ss:$8 sm:$0x3] %vm121, %v120
    %s123 = scalar_lea.vmem %s0, 18
    %v124 = vld [vmem:[%s123] sm:$0x1]
    %s125 = scalar_lea.vmem %s0, 49
    %v126 = vld [vmem:[%s125] sm:$0x2]
    %vm127 = vcmask 1041409
    %v128 = vsel %vm127, %v126, %v124
    %129 = vrot.lane.b32.xlu0 %v128, 72
    %v130 = vpop.permute.xlu0 %129
    %vm131 = vcmask 622144
    %132 = vst.msk [vmem:[#allocation0] ss:$8 sm:$0x3] %vm131, %v130
    %s133 = scalar_lea.vmem %s0, 17
    %v134 = vld [vmem:[%s133] sm:$0x1]
    %s135 = scalar_lea.vmem %s0, 48
    %v136 = vld [vmem:[%s135] sm:$0x2]
    %vm137 = vcmask 1041409
    %v138 = vsel %vm137, %v136, %v134
    %139 = vrot.lane.b32.xlu0 %v138, 68
    %v140 = vpop.permute.xlu0 %139
    %vm141 = vcmask 589344
    %142 = vst.msk [vmem:[#allocation0] ss:$8 sm:$0x3] %vm141, %v140
    %s143 = scalar_lea.vmem %s0, 16
    %v144 = vld [vmem:[%s143] sm:$0x1]
    %s145 = scalar_lea.vmem %s0, 47
    %v146 = vld [vmem:[%s145] sm:$0x2]
    %vm147 = vcmask 1041409
    %v148 = vsel %vm147, %v146, %v144
    %149 = vrot.lane.b32.xlu0 %v148, 64
    %v150 = vpop.permute.xlu0 %149
    %vm151 = vcmask 556544
    %152 = vst.msk [vmem:[#allocation0] ss:$8 sm:$0x3] %vm151, %v150
    %s153 = scalar_lea.vmem %s0, 15
    %v154 = vld [vmem:[%s153] sm:$0x1]
    %s155 = scalar_lea.vmem %s0, 46
    %v156 = vld [vmem:[%s155] sm:$0x2]
    %vm157 = vcmask 1041409
    %v158 = vsel %vm157, %v156, %v154
    %159 = vrot.lane.b32.xlu0 %v158, 60
    %v160 = vpop.permute.xlu0 %159
    %vm161 = vcmask 523744
    %162 = vst.msk [vmem:[#allocation0] ss:$8 sm:$0x3] %vm161, %v160
    %s163 = scalar_lea.vmem %s0, 14
    %v164 = vld [vmem:[%s163] sm:$0x1]
    %s165 = scalar_lea.vmem %s0, 45
    %v166 = vld [vmem:[%s165] sm:$0x2]
    %vm167 = vcmask 1041409
    %v168 = vsel %vm167, %v166, %v164
    %169 = vrot.lane.b32.xlu0 %v168, 56
    %v170 = vpop.permute.xlu0 %169
    %vm171 = vcmask 490944
    %172 = vst.msk [vmem:[#allocation0] ss:$8 sm:$0x3] %vm171, %v170
    %s173 = scalar_lea.vmem %s0, 13
    %v174 = vld [vmem:[%s173] sm:$0x1]
    %s175 = scalar_lea.vmem %s0, 44
    %v176 = vld [vmem:[%s175] sm:$0x2]
    %vm177 = vcmask 1041409
    %v178 = vsel %vm177, %v176, %v174
    %179 = vrot.lane.b32.xlu0 %v178, 52
    %v180 = vpop.permute.xlu0 %179
    %vm181 = vcmask 458144
    %182 = vst.msk [vmem:[#allocation0] ss:$8 sm:$0x3] %vm181, %v180
    %s183 = scalar_lea.vmem %s0, 12
    %v184 = vld [vmem:[%s183] sm:$0x1]
    %s185 = scalar_lea.vmem %s0, 43
    %v186 = vld [vmem:[%s185] sm:$0x2]
    %vm187 = vcmask 1041409
    %v188 = vsel %vm187, %v186, %v184
    %189 = vrot.lane.b32.xlu0 %v188, 48
    %v190 = vpop.permute.xlu0 %189
    %vm191 = vcmask 425344
    %192 = vst.msk [vmem:[#allocation0] ss:$8 sm:$0x3] %vm191, %v190
    %s193 = scalar_lea.vmem %s0, 11
    %v194 = vld [vmem:[%s193] sm:$0x1]
    %s195 = scalar_lea.vmem %s0, 42
    %v196 = vld [vmem:[%s195] sm:$0x2]
    %vm197 = vcmask 1041409
    %v198 = vsel %vm197, %v196, %v194
    %199 = vrot.lane.b32.xlu0 %v198, 44
    %v200 = vpop.permute.xlu0 %199
    %vm201 = vcmask 392544
    %202 = vst.msk [vmem:[#allocation0] ss:$8 sm:$0x3] %vm201, %v200
    %s203 = scalar_lea.vmem %s0, 10
    %v204 = vld [vmem:[%s203] sm:$0x1]
    %s205 = scalar_lea.vmem %s0, 41
    %v206 = vld [vmem:[%s205] sm:$0x2]
    %vm207 = vcmask 1041409
    %v208 = vsel %vm207, %v206, %v204
    %209 = vrot.lane.b32.xlu0 %v208, 40
    %v210 = vpop.permute.xlu0 %209
    %vm211 = vcmask 359744
    %212 = vst.msk [vmem:[#allocation0] ss:$8 sm:$0x3] %vm211, %v210
    %s213 = scalar_lea.vmem %s0, 9
    %v214 = vld [vmem:[%s213] sm:$0x1]
    %s215 = scalar_lea.vmem %s0, 40
    %v216 = vld [vmem:[%s215] sm:$0x2]
    %vm217 = vcmask 1041409
    %v218 = vsel %vm217, %v216, %v214
    %219 = vrot.lane.b32.xlu0 %v218, 36
    %v220 = vpop.permute.xlu0 %219
    %vm221 = vcmask 326944
    %222 = vst.msk [vmem:[#allocation0] ss:$8 sm:$0x3] %vm221, %v220
    %s223 = scalar_lea.vmem %s0, 8
    %v224 = vld [vmem:[%s223] sm:$0x1]
    %s225 = scalar_lea.vmem %s0, 39
    %v226 = vld [vmem:[%s225] sm:$0x2]
    %vm227 = vcmask 1041409
    %v228 = vsel %vm227, %v226, %v224
    %229 = vrot.lane.b32.xlu0 %v228, 32
    %v230 = vpop.permute.xlu0 %229
    %vm231 = vcmask 294144
    %232 = vst.msk [vmem:[#allocation0] ss:$8 sm:$0x3] %vm231, %v230
    %s233 = scalar_lea.vmem %s0, 7
    %v234 = vld [vmem:[%s233] sm:$0x1]
    %s235 = scalar_lea.vmem %s0, 38
    %v236 = vld [vmem:[%s235] sm:$0x2]
    %vm237 = vcmask 1041409
    %v238 = vsel %vm237, %v236, %v234
    %239 = vrot.lane.b32.xlu0 %v238, 28
    %v240 = vpop.permute.xlu0 %239
    %vm241 = vcmask 261344
    %242 = vst.msk [vmem:[#allocation0] ss:$8 sm:$0x3] %vm241, %v240
    %s243 = scalar_lea.vmem %s0, 6
    %v244 = vld [vmem:[%s243] sm:$0x1]
    %s245 = scalar_lea.vmem %s0, 37
    %v246 = vld [vmem:[%s245] sm:$0x2]
    %vm247 = vcmask 1041409
    %v248 = vsel %vm247, %v246, %v244
    %249 = vrot.lane.b32.xlu0 %v248, 24
    %v250 = vpop.permute.xlu0 %249
    %vm251 = vcmask 228544
    %252 = vst.msk [vmem:[#allocation0] ss:$8 sm:$0x3] %vm251, %v250
    %s253 = scalar_lea.vmem %s0, 5
    %v254 = vld [vmem:[%s253] sm:$0x1]
    %s255 = scalar_lea.vmem %s0, 36
    %v256 = vld [vmem:[%s255] sm:$0x2]
    %vm257 = vcmask 1041409
    %v258 = vsel %vm257, %v256, %v254
    %259 = vrot.lane.b32.xlu0 %v258, 20
    %v260 = vpop.permute.xlu0 %259
    %vm261 = vcmask 195744
    %262 = vst.msk [vmem:[#allocation0] ss:$8 sm:$0x3] %vm261, %v260
    %s263 = scalar_lea.vmem %s0, 4
    %v264 = vld [vmem:[%s263] sm:$0x1]
    %s265 = scalar_lea.vmem %s0, 35
    %v266 = vld [vmem:[%s265] sm:$0x2]
    %vm267 = vcmask 1041409
    %v268 = vsel %vm267, %v266, %v264
    %269 = vrot.lane.b32.xlu0 %v268, 16
    %v270 = vpop.permute.xlu0 %269
    %vm271 = vcmask 162944
    %272 = vst.msk [vmem:[#allocation0] ss:$8 sm:$0x3] %vm271, %v270
    %s273 = scalar_lea.vmem %s0, 3
    %v274 = vld [vmem:[%s273] sm:$0x1]
    %s275 = scalar_lea.vmem %s0, 34
    %v276 = vld [vmem:[%s275] sm:$0x2]
    %vm277 = vcmask 1041409
    %v278 = vsel %vm277, %v276, %v274
    %279 = vrot.lane.b32.xlu0 %v278, 12
    %v280 = vpop.permute.xlu0 %279
    %vm281 = vcmask 130144
    %282 = vst.msk [vmem:[#allocation0] ss:$8 sm:$0x3] %vm281, %v280
    %s283 = scalar_lea.vmem %s0, 2
    %v284 = vld [vmem:[%s283] sm:$0x1]
    %s285 = scalar_lea.vmem %s0, 33
    %v286 = vld [vmem:[%s285] sm:$0x2]
    %vm287 = vcmask 1041409
    %v288 = vsel %vm287, %v286, %v284
    %289 = vrot.lane.b32.xlu0 %v288, 8
    %v290 = vpop.permute.xlu0 %289
    %vm291 = vcmask 97344
    %292 = vst.msk [vmem:[#allocation0] ss:$8 sm:$0x3] %vm291, %v290
    %s293 = scalar_lea.vmem %s0, 1
    %v294 = vld [vmem:[%s293] sm:$0x1]
    %s295 = scalar_lea.vmem %s0, 32
    %v296 = vld [vmem:[%s295] sm:$0x2]
    %vm297 = vcmask 1041409
    %v298 = vsel %vm297, %v296, %v294
    %299 = vrot.lane.b32.xlu0 %v298, 4
    %v300 = vpop.permute.xlu0 %299
    %vm301 = vcmask 64544
    %302 = vst.msk [vmem:[#allocation0] ss:$8 sm:$0x3] %vm301, %v300
    %s304 = ssub.s32 2, 1
    %v305 = vld [vmem:[#allocation0] sm:%s304]
    %s307 = ssub.s32 2, 1
    %308 = vst [vmem:[%s1] sm:%s307] %v305
    %s309 = scalar_lea.vmem [#allocation0], 8
    %v310 = vld [vmem:[%s309] sm:%s304]
    %s312 = ssub.s32 2, 1
    %s313 = scalar_lea.vmem %s1, 1
    %314 = vst [vmem:[%s313] sm:%s312] %v310

// kernel: tile.23
$region0: #{tile.23}
  #allocation0 [shape = 's32[1]{0}', space=sflag, size = 0x4, scoped, tag = 'scoped memory for tile.23']
  %s0 = inlined_call_operand.vmem [shape: f32[16], index: 0, kind: input, shape index: {}]
  %s1 = inlined_call_operand.vmem [shape: f32[56,16], index: 1, kind: output, shape index: {}]
  // Predicated region
  $region2: #{tile.23} parent=0 // pred_check
    _
  $region3: #{tile.23} parent=0 // pred_check_branch
    %3 = sbr.rel (0) target = $region5
  $region4: #{tile.23} parent=0 // pred_region
    _
  $region5: #{tile.23} parent=0 // pred_fallthru
    _
  %v4 = vld [vmem:[%s0] ss:$0 sm:$0xff]
  %5 = vst [vmem:[%s1] sm:$0xff] %v4
  %s6 = scalar_lea.vmem %s1, 8
  %7 = vst [vmem:[%s6] sm:$0xff] %v4
  %s8 = scalar_lea.vmem %s1, 16
  %9 = vst [vmem:[%s8] sm:$0xff] %v4
  %s10 = scalar_lea.vmem %s1, 24
  %11 = vst [vmem:[%s10] sm:$0xff] %v4
  %s12 = scalar_lea.vmem %s1, 32
  %13 = vst [vmem:[%s12] sm:$0xff] %v4
  %s14 = scalar_lea.vmem %s1, 40
  %15 = vst [vmem:[%s14] sm:$0xff] %v4
  %s16 = scalar_lea.vmem %s1, 48
  %17 = vst [vmem:[%s16] sm:$0xff] %v4

// kernel: tile.24
$region0: #{tile.24}
  %s0 = inlined_call_operand.vmem [shape: f32[56,16], index: 0, kind: input, shape index: {}]
  %s1 = inlined_call_operand.vmem [shape: f32[1,896], index: 1, kind: output, shape index: {}]
  $region1: #{tile.24} parent=0
    #allocation0 [shape = 'u8[28672]{0}', space=vmem, size = 0x7000, scoped, tag = 'scoped mem for output reshape']
    %v2 = vld [vmem:[%s0] ss:$8 sm:$0xf]
    %v3 = vld [vmem:[%s0] ss:$8 sm:$0x70]
    %vm4 = vcmask 1046532
    %v5 = vsel %vm4, %v3, %v2
    %vm6 = vcmask 130048
    %7 = vst.msk [vmem:[#allocation0] ss:$8 sm:$0xf] %vm6, %v5
    %8 = vst.msk [vmem:[#allocation0] ss:$8 sm:$0x70] %vm6, %v5
    %s9 = scalar_lea.vmem %s0, 7
    %v10 = vld [vmem:[%s9] ss:$8 sm:$0xf]
    %s11 = scalar_lea.vmem %s0, 7
    %v12 = vld [vmem:[%s11] ss:$8 sm:$0x70]
    %vm13 = vcmask 1046532
    %v14 = vsel %vm13, %v12, %v10
    %15 = vrot.lane.b32.xlu0 %v14, 112
    %v16 = vpop.permute.xlu0 %15
    %vm17 = vcmask 1048448
    %18 = vst.msk [vmem:[#allocation0] ss:$8 sm:$0xf] %vm17, %v16
    %19 = vst.msk [vmem:[#allocation0] ss:$8 sm:$0x70] %vm17, %v16
    %s20 = scalar_lea.vmem %s0, 6
    %v21 = vld [vmem:[%s20] ss:$8 sm:$0xf]
    %s22 = scalar_lea.vmem %s0, 6
    %v23 = vld [vmem:[%s22] ss:$8 sm:$0x70]
    %vm24 = vcmask 1046532
    %v25 = vsel %vm24, %v23, %v21
    %26 = vrot.lane.b32.xlu0 %v25, 96
    %v27 = vpop.permute.xlu0 %26
    %vm28 = vcmask 917248
    %29 = vst.msk [vmem:[#allocation0] ss:$8 sm:$0xf] %vm28, %v27
    %30 = vst.msk [vmem:[#allocation0] ss:$8 sm:$0x70] %vm28, %v27
    %s31 = scalar_lea.vmem %s0, 5
    %v32 = vld [vmem:[%s31] ss:$8 sm:$0xf]
    %s33 = scalar_lea.vmem %s0, 5
    %v34 = vld [vmem:[%s33] ss:$8 sm:$0x70]
    %vm35 = vcmask 1046532
    %v36 = vsel %vm35, %v34, %v32
    %37 = vrot.lane.b32.xlu0 %v36, 80
    %v38 = vpop.permute.xlu0 %37
    %vm39 = vcmask 786048
    %40 = vst.msk [vmem:[#allocation0] ss:$8 sm:$0xf] %vm39, %v38
    %41 = vst.msk [vmem:[#allocation0] ss:$8 sm:$0x70] %vm39, %v38
    %s42 = scalar_lea.vmem %s0, 4
    %v43 = vld [vmem:[%s42] ss:$8 sm:$0xf]
    %s44 = scalar_lea.vmem %s0, 4
    %v45 = vld [vmem:[%s44] ss:$8 sm:$0x70]
    %vm46 = vcmask 1046532
    %v47 = vsel %vm46, %v45, %v43
    %48 = vrot.lane.b32.xlu0 %v47, 64
    %v49 = vpop.permute.xlu0 %48
    %vm50 = vcmask 654848
    %51 = vst.msk [vmem:[#allocation0] ss:$8 sm:$0xf] %vm50, %v49
    %52 = vst.msk [vmem:[#allocation0] ss:$8 sm:$0x70] %vm50, %v49
    %s53 = scalar_lea.vmem %s0, 3
    %v54 = vld [vmem:[%s53] ss:$8 sm:$0xf]
    %s55 = scalar_lea.vmem %s0, 3
    %v56 = vld [vmem:[%s55] ss:$8 sm:$0x70]
    %vm57 = vcmask 1046532
    %v58 = vsel %vm57, %v56, %v54
    %59 = vrot.lane.b32.xlu0 %v58, 48
    %v60 = vpop.permute.xlu0 %59
    %vm61 = vcmask 523648
    %62 = vst.msk [vmem:[#allocation0] ss:$8 sm:$0xf] %vm61, %v60
    %63 = vst.msk [vmem:[#allocation0] ss:$8 sm:$0x70] %vm61, %v60
    %s64 = scalar_lea.vmem %s0, 2
    %v65 = vld [vmem:[%s64] ss:$8 sm:$0xf]
    %s66 = scalar_lea.vmem %s0, 2
    %v67 = vld [vmem:[%s66] ss:$8 sm:$0x70]
    %vm68 = vcmask 1046532
    %v69 = vsel %vm68, %v67, %v65
    %70 = vrot.lane.b32.xlu0 %v69, 32
    %v71 = vpop.permute.xlu0 %70
    %vm72 = vcmask 392448
    %73 = vst.msk [vmem:[#allocation0] ss:$8 sm:$0xf] %vm72, %v71
    %74 = vst.msk [vmem:[#allocation0] ss:$8 sm:$0x70] %vm72, %v71
    %s75 = scalar_lea.vmem %s0, 1
    %v76 = vld [vmem:[%s75] ss:$8 sm:$0xf]
    %s77 = scalar_lea.vmem %s0, 1
    %v78 = vld [vmem:[%s77] ss:$8 sm:$0x70]
    %vm79 = vcmask 1046532
    %v80 = vsel %vm79, %v78, %v76
    %81 = vrot.lane.b32.xlu0 %v80, 16
    %v82 = vpop.permute.xlu0 %81
    %vm83 = vcmask 261248
    %84 = vst.msk [vmem:[#allocation0] ss:$8 sm:$0xf] %vm83, %v82
    %85 = vst.msk [vmem:[#allocation0] ss:$8 sm:$0x70] %vm83, %v82
    %s87 = ssub.s32 2, 1
    %v88 = vld [vmem:[#allocation0] sm:%s87]
    %s90 = ssub.s32 2, 1
    %91 = vst [vmem:[%s1] sm:%s90] %v88
    %s92 = scalar_lea.vmem [#allocation0], 8
    %v93 = vld [vmem:[%s92] sm:%s87]
    %s95 = ssub.s32 2, 1
    %s96 = scalar_lea.vmem %s1, 1
    %97 = vst [vmem:[%s96] sm:%s95] %v93
    %s98 = scalar_lea.vmem [#allocation0], 16
    %v99 = vld [vmem:[%s98] sm:%s87]
    %s101 = ssub.s32 2, 1
    %s102 = scalar_lea.vmem %s1, 2
    %103 = vst [vmem:[%s102] sm:%s101] %v99
    %s104 = scalar_lea.vmem [#allocation0], 24
    %v105 = vld [vmem:[%s104] sm:%s87]
    %s107 = ssub.s32 2, 1
    %s108 = scalar_lea.vmem %s1, 3
    %109 = vst [vmem:[%s108] sm:%s107] %v105
    %s110 = scalar_lea.vmem [#allocation0], 32
    %v111 = vld [vmem:[%s110] sm:%s87]
    %s113 = ssub.s32 2, 1
    %s114 = scalar_lea.vmem %s1, 4
    %115 = vst [vmem:[%s114] sm:%s113] %v111
    %s116 = scalar_lea.vmem [#allocation0], 40
    %v117 = vld [vmem:[%s116] sm:%s87]
    %s119 = ssub.s32 2, 1
    %s120 = scalar_lea.vmem %s1, 5
    %121 = vst [vmem:[%s120] sm:%s119] %v117
    %s122 = scalar_lea.vmem [#allocation0], 48
    %v123 = vld [vmem:[%s122] sm:%s87]
    %s125 = ssub.s32 2, 1
    %s126 = scalar_lea.vmem %s1, 6
    %127 = vst [vmem:[%s126] sm:%s125] %v123

// kernel: tile.28
$region0: #{tile.28}
  #allocation0 [shape = 's32[1]{0}', space=sflag, size = 0x4, scoped, tag = 'scoped memory for tile.28']
  %s0 = inlined_call_operand.vmem [shape: f32[32], index: 0, kind: input, shape index: {}]
  %s1 = inlined_call_operand.vmem [shape: f32[16,32], index: 1, kind: output, shape index: {}]
  // Predicated region
  $region2: #{tile.28} parent=0 // pred_check
    _
  $region3: #{tile.28} parent=0 // pred_check_branch
    %3 = sbr.rel (0) target = $region5
  $region4: #{tile.28} parent=0 // pred_region
    _
  $region5: #{tile.28} parent=0 // pred_fallthru
    _
  %v4 = vld [vmem:[%s0] ss:$0 sm:$0xff]
  %5 = vst [vmem:[%s1] sm:$0xff] %v4
  %s6 = scalar_lea.vmem %s1, 8
  %7 = vst [vmem:[%s6] sm:$0xff] %v4

// kernel: tile.29
$region0: #{tile.29}
  %s0 = inlined_call_operand.vmem [shape: f32[16,32], index: 0, kind: input, shape index: {}]
  %s1 = inlined_call_operand.vmem [shape: f32[1,512], index: 1, kind: output, shape index: {}]
  $region1: #{tile.29} parent=0
    #allocation0 [shape = 'u8[16384]{0}', space=vmem, size = 0x4000, scoped, tag = 'scoped mem for output reshape']
    %v2 = vld [vmem:[%s0] ss:$4 sm:$0xf]
    %vm3 = vcmask 261120
    %4 = vst.msk [vmem:[#allocation0] ss:$8 sm:$0xf] %vm3, %v2
    %s5 = scalar_lea.vmem %s0, 3
    %v6 = vld [vmem:[%s5] ss:$4 sm:$0xf]
    %7 = vrot.lane.b32.xlu0 %v6, 96
    %v8 = vpop.permute.xlu0 %7
    %vm9 = vcmask 1048320
    %10 = vst.msk [vmem:[#allocation0] ss:$8 sm:$0xf] %vm9, %v8
    %s11 = scalar_lea.vmem %s0, 2
    %v12 = vld [vmem:[%s11] ss:$4 sm:$0xf]
    %13 = vrot.lane.b32.xlu0 %v12, 64
    %v14 = vpop.permute.xlu0 %13
    %vm15 = vcmask 785920
    %16 = vst.msk [vmem:[#allocation0] ss:$8 sm:$0xf] %vm15, %v14
    %s17 = scalar_lea.vmem %s0, 1
    %v18 = vld [vmem:[%s17] ss:$4 sm:$0xf]
    %19 = vrot.lane.b32.xlu0 %v18, 32
    %v20 = vpop.permute.xlu0 %19
    %vm21 = vcmask 523520
    %22 = vst.msk [vmem:[#allocation0] ss:$8 sm:$0xf] %vm21, %v20
    %s24 = ssub.s32 2, 1
    %v25 = vld [vmem:[#allocation0] sm:%s24]
    %s27 = ssub.s32 2, 1
    %28 = vst [vmem:[%s1] sm:%s27] %v25
    %s29 = scalar_lea.vmem [#allocation0], 8
    %v30 = vld [vmem:[%s29] sm:%s24]
    %s32 = ssub.s32 2, 1
    %s33 = scalar_lea.vmem %s1, 1
    %34 = vst [vmem:[%s33] sm:%s32] %v30
    %s35 = scalar_lea.vmem [#allocation0], 16
    %v36 = vld [vmem:[%s35] sm:%s24]
    %s38 = ssub.s32 2, 1
    %s39 = scalar_lea.vmem %s1, 2
    %40 = vst [vmem:[%s39] sm:%s38] %v36
    %s41 = scalar_lea.vmem [#allocation0], 24
    %v42 = vld [vmem:[%s41] sm:%s24]
    %s44 = ssub.s32 2, 1
    %s45 = scalar_lea.vmem %s1, 3
    %46 = vst [vmem:[%s45] sm:%s44] %v42

// kernel: remora_signal_cnn_forward.1
$region0: #{remora_signal_cnn_forward.1}
  #allocation0 [shape = 'u32[]', space=smem, size = 0x4, offset = 0x4, fixed_abs, tag = 'smem constant byte address 0x4 - core index']
  #allocation1 [shape = 'u32[72,128]{1,0:T(1,128)}', space=vmem, size = 0x9000, scoped, tag = 'internal scratch']
  %s0 = inlined_call_operand.vmem [shape: f32[2,64], index: 0, kind: input, shape index: {}]
  %s1 = inlined_call_operand.vmem [shape: f32[64,240], index: 1, kind: input, shape index: {}]
  %s2 = inlined_call_operand.vmem [shape: f32[1,240], index: 2, kind: input, shape index: {}]
  %s3 = inlined_call_operand.vmem [shape: f32[240,896], index: 3, kind: input, shape index: {}]
  %s4 = inlined_call_operand.vmem [shape: f32[1,896], index: 4, kind: input, shape index: {}]
  %s5 = inlined_call_operand.vmem [shape: f32[896,512], index: 5, kind: input, shape index: {}]
  %s6 = inlined_call_operand.vmem [shape: f32[1,512], index: 6, kind: input, shape index: {}]
  %s7 = inlined_call_operand.vmem [shape: f32[2,512], index: 7, kind: output, shape index: {}]
  %s8 = sld [smem:[#allocation0]]
  $region38: #{remora_signal_cnn_forward.1} parent=0
    _
  %s10 = ssub.s32 1, %s8
  %s11 = scalar_select 0, %s10, %s8
  // Predicated region
  $region2: #{remora_signal_cnn_forward.1} parent=0 // pred_check
    _
  $region3: #{remora_signal_cnn_forward.1} parent=0 // pred_check_branch
    %13 = sbr.rel (0) target = $region5
  $region4: #{remora_signal_cnn_forward.1} parent=0 // pred_region
    _
  $region5: #{remora_signal_cnn_forward.1} parent=0 // pred_fallthru
    _
  // Predicated region
  $region6: #{remora_signal_cnn_forward.1} parent=0 // pred_check
    _
  $region7: #{remora_signal_cnn_forward.1} parent=0 // pred_check_branch
    %15 = sbr.rel (0) target = $region9
  $region8: #{remora_signal_cnn_forward.1} parent=0 // pred_region
    _
  $region9: #{remora_signal_cnn_forward.1} parent=0 // pred_fallthru
    _
  // Predicated region
  $region10: #{remora_signal_cnn_forward.1} parent=0 // pred_check
    _
  $region11: #{remora_signal_cnn_forward.1} parent=0 // pred_check_branch
    %17 = sbr.rel (0) target = $region13
  $region12: #{remora_signal_cnn_forward.1} parent=0 // pred_region
    _
  $region13: #{remora_signal_cnn_forward.1} parent=0 // pred_fallthru
    _
  // Predicated region
  $region14: #{remora_signal_cnn_forward.1} parent=0 // pred_check
    _
  $region15: #{remora_signal_cnn_forward.1} parent=0 // pred_check_branch
    %19 = sbr.rel (0) target = $region17
  $region16: #{remora_signal_cnn_forward.1} parent=0 // pred_region
    _
  $region17: #{remora_signal_cnn_forward.1} parent=0 // pred_fallthru
    _
  // Predicated region
  $region18: #{remora_signal_cnn_forward.1} parent=0 // pred_check
    _
  $region19: #{remora_signal_cnn_forward.1} parent=0 // pred_check_branch
    %21 = sbr.rel (0) target = $region21
  $region20: #{remora_signal_cnn_forward.1} parent=0 // pred_region
    _
  $region21: #{remora_signal_cnn_forward.1} parent=0 // pred_fallthru
    _
  // Predicated region
  $region22: #{remora_signal_cnn_forward.1} parent=0 // pred_check
    _
  $region23: #{remora_signal_cnn_forward.1} parent=0 // pred_check_branch
    %23 = sbr.rel (0) target = $region25
  $region24: #{remora_signal_cnn_forward.1} parent=0 // pred_region
    _
  $region25: #{remora_signal_cnn_forward.1} parent=0 // pred_fallthru
    _
  // Predicated region
  $region26: #{remora_signal_cnn_forward.1} parent=0 // pred_check
    _
  $region27: #{remora_signal_cnn_forward.1} parent=0 // pred_check_branch
    %25 = sbr.rel (0) target = $region29
  $region28: #{remora_signal_cnn_forward.1} parent=0 // pred_region
    _
  $region29: #{remora_signal_cnn_forward.1} parent=0 // pred_fallthru
    _
  %v26 = vld [vmem:[%s0] sm:$0x3]
  %v27 = vld [vmem:[%s1] sm:$0xff]
  %v28 = vld [vmem:[%s1 + $0x8] sm:$0xff]
  %v29 = vld [vmem:[%s1 + $0x10] sm:$0xff]
  %v30 = vld [vmem:[%s1 + $0x18] sm:$0xff]
  %v31 = vld [vmem:[%s1 + $0x20] sm:$0xff]
  %v32 = vld [vmem:[%s1 + $0x28] sm:$0xff]
  %v33 = vld [vmem:[%s1 + $0x30] sm:$0xff]
  %v34 = vld [vmem:[%s1 + $0x38] sm:$0xff]
  %v35 = vld [vmem:[%s1 + $0x40] sm:$0xff]
  %v36 = vld [vmem:[%s1 + $0x48] sm:$0xff]
  %v37 = vld [vmem:[%s1 + $0x50] sm:$0xff]
  %v38 = vld [vmem:[%s1 + $0x58] sm:$0xff]
  %v39 = vld [vmem:[%s1 + $0x60] sm:$0xff]
  %v40 = vld [vmem:[%s1 + $0x68] sm:$0xff]
  %v41 = vld [vmem:[%s1 + $0x70] sm:$0xff]
  %v42 = vld [vmem:[%s1 + $0x78] sm:$0xff]
  %v43 = vld [vmem:[%s2] sm:$0x3]
  %v45 = vperm.slane %v43, 0
  %v46 = vperm.slane %v43, 1
  %vm49 = vcmask 523264
  %v51 = vsel %vm49, %v26, 0
  %53 = vmatpush.msra.mxu0 0.0
  %54 = vmatpush.msra.mxu0 0.0
  %55 = vmatpush.msra.mxu0 0.0
  %56 = vmatpush.msra.mxu0 0.0
  %57 = vmatpush.msra.mxu0 0.0
  %58 = vmatpush.msra.mxu0 0.0
  %59 = vmatpush.msra.mxu0 0.0
  %60 = vmatpush.msra.mxu0 0.0
  %61 = vmatpush.msra.mxu0 %v41
  %62 = vmatpush.msra.mxu0 %v39
  %63 = vmatpush.msra.mxu0 %v37
  %64 = vmatpush.msra.mxu0 %v35
  %65 = vmatpush.msra.mxu0 %v33
  %66 = vmatpush.msra.mxu0 %v31
  %67 = vmatpush.msra.mxu0 %v29
  %68 = vmatpush.msra.mxu0 %v27
  %69 = vmatmul.f32.gmra.mxu0 %v51
  %v70 = vpop.f32.mrf.mxu0
  %v71 = vadd.f32 %v45, %v70
  %72 = vdwg.mxu0
  %73 = vmatpush.msra.mxu0 0.0
  %74 = vmatpush.msra.mxu0 0.0
  %75 = vmatpush.msra.mxu0 0.0
  %76 = vmatpush.msra.mxu0 0.0
  %77 = vmatpush.msra.mxu0 0.0
  %78 = vmatpush.msra.mxu0 0.0
  %79 = vmatpush.msra.mxu0 0.0
  %80 = vmatpush.msra.mxu0 0.0
  %81 = vmatpush.msra.mxu0 %v42
  %82 = vmatpush.msra.mxu0 %v40
  %83 = vmatpush.msra.mxu0 %v38
  %84 = vmatpush.msra.mxu0 %v36
  %85 = vmatpush.msra.mxu0 %v34
  %86 = vmatpush.msra.mxu0 %v32
  %87 = vmatpush.msra.mxu0 %v30
  %88 = vmatpush.msra.mxu0 %v28
  %89 = vmatmul.f32.gmra.mxu0 %v51
  %v90 = vpop.f32.mrf.mxu0
  %v91 = vadd.f32 %v46, %v90
  %92 = vdwg.mxu0
  %v93 = vxor.u32 %v71, 2147483648
  %v94 = vxor.u32 %v91, 2147483648
  %v95 = vmul.f32 %v93, 1.442695
  %v96 = vpow.pop %v95
  %v97 = vmul.f32 %v94, 1.442695
  %v98 = vpow.pop %v97
  %v99 = vadd.f32 %v96, 1.0
  %v100 = vadd.f32 %v98, 1.0
  %v101 = vrcp.pop %v99
  %v102 = vmul.f32 %v99, %v101
  %v103 = vsub.f32 1.0, %v102
  %v104 = vmul.f32 %v101, %v103
  %v105 = vadd.f32 %v101, %v104
  %vm106 = vweird.f32 %v99
  %vm107 = vweird.f32 %v101
  %vm108 = vmor %vm106, %vm107
  %v109 = vsel %vm108, %v101, %v105
  %v110 = vand.u32 2147483647, %v99
  %vm111 = vcmp.eq.f32.partialorder %v110, 8.507059e+37
  %v112 = vand.u32 %v99, 2147483648
  %v113 = vor.u32 1.1754944e-38, %v112
  %v114 = vsel %vm111, %v113, %v109
  %v115 = vmul.f32 1.0, %v114
  %v116 = vrcp.pop %v100
  %v117 = vmul.f32 %v100, %v116
  %v118 = vsub.f32 1.0, %v117
  %v119 = vmul.f32 %v116, %v118
  %v120 = vadd.f32 %v116, %v119
  %vm121 = vweird.f32 %v100
  %vm122 = vweird.f32 %v116
  %vm123 = vmor %vm121, %vm122
  %v124 = vsel %vm123, %v116, %v120
  %v125 = vand.u32 2147483647, %v100
  %vm126 = vcmp.eq.f32.partialorder %v125, 8.507059e+37
  %v127 = vand.u32 %v100, 2147483648
  %v128 = vor.u32 1.1754944e-38, %v127
  %v129 = vsel %vm126, %v128, %v124
  %v130 = vmul.f32 1.0, %v129
  %v131 = vmul.f32 %v71, %v115
  %v132 = vmul.f32 %v91, %v130
  %v133 = vld [vmem:[%s3] sm:$0xff]
  %v134 = vld [vmem:[%s3 + $0x8] sm:$0xff]
  %v135 = vld [vmem:[%s3 + $0x10] sm:$0xff]
  %v136 = vld [vmem:[%s3 + $0x18] sm:$0xff]
  %v137 = vld [vmem:[%s3 + $0x20] sm:$0xff]
  %v138 = vld [vmem:[%s3 + $0x28] sm:$0xff]
  %v139 = vld [vmem:[%s3 + $0x30] sm:$0xff]
  %v140 = vld [vmem:[%s3 + $0x38] sm:$0xff]
  %v141 = vld [vmem:[%s3 + $0x40] sm:$0xff]
  %v142 = vld [vmem:[%s3 + $0x48] sm:$0xff]
  %v143 = vld [vmem:[%s3 + $0x50] sm:$0xff]
  %v144 = vld [vmem:[%s3 + $0x58] sm:$0xff]
  %v145 = vld [vmem:[%s3 + $0x60] sm:$0xff]
  %v146 = vld [vmem:[%s3 + $0x68] sm:$0xff]
  %v147 = vld [vmem:[%s3 + $0x70] sm:$0xff]
  %v148 = vld [vmem:[%s3 + $0x78] sm:$0xff]
  %v149 = vld [vmem:[%s3 + $0x80] sm:$0xff]
  %v150 = vld [vmem:[%s3 + $0x88] sm:$0xff]
  %v151 = vld [vmem:[%s3 + $0x90] sm:$0xff]
  %v152 = vld [vmem:[%s3 + $0x98] sm:$0xff]
  %v153 = vld [vmem:[%s3 + $0xa0] sm:$0xff]
  %v154 = vld [vmem:[%s3 + $0xa8] sm:$0xff]
  %v155 = vld [vmem:[%s3 + $0xb0] sm:$0xff]
  %v156 = vld [vmem:[%s3 + $0xb8] sm:$0xff]
  %v157 = vld [vmem:[%s3 + $0xc0] sm:$0xff]
  %v158 = vld [vmem:[%s3 + $0xc8] sm:$0xff]
  %v159 = vld [vmem:[%s3 + $0xd0] sm:$0xff]
  %v160 = vld [vmem:[%s3 + $0xd8] sm:$0xff]
  %v161 = vld [vmem:[%s3 + $0xe0] sm:$0xff]
  %v162 = vld [vmem:[%s3 + $0xe8] sm:$0xff]
  %v163 = vld [vmem:[%s3 + $0xf0] sm:$0xff]
  %v164 = vld [vmem:[%s3 + $0xf8] sm:$0xff]
  %v165 = vld [vmem:[%s3 + $0x100] sm:$0xff]
  %v166 = vld [vmem:[%s3 + $0x108] sm:$0xff]
  %v167 = vld [vmem:[%s3 + $0x110] sm:$0xff]
  %v168 = vld [vmem:[%s3 + $0x118] sm:$0xff]
  %v169 = vld [vmem:[%s3 + $0x120] sm:$0xff]
  %v170 = vld [vmem:[%s3 + $0x128] sm:$0xff]
  %v171 = vld [vmem:[%s3 + $0x130] sm:$0xff]
  %v172 = vld [vmem:[%s3 + $0x138] sm:$0xff]
  %v173 = vld [vmem:[%s3 + $0x140] sm:$0xff]
  %v174 = vld [vmem:[%s3 + $0x148] sm:$0xff]
  %v175 = vld [vmem:[%s3 + $0x150] sm:$0xff]
  %v176 = vld [vmem:[%s3 + $0x158] sm:$0xff]
  %v177 = vld [vmem:[%s3 + $0x160] sm:$0xff]
  %v178 = vld [vmem:[%s3 + $0x168] sm:$0xff]
  %v179 = vld [vmem:[%s3 + $0x170] sm:$0xff]
  %v180 = vld [vmem:[%s3 + $0x178] sm:$0xff]
  %v181 = vld [vmem:[%s3 + $0x180] sm:$0xff]
  %v182 = vld [vmem:[%s3 + $0x188] sm:$0xff]
  %v183 = vld [vmem:[%s3 + $0x190] sm:$0xff]
  %v184 = vld [vmem:[%s3 + $0x198] sm:$0xff]
  %v185 = vld [vmem:[%s3 + $0x1a0] sm:$0xff]
  %v186 = vld [vmem:[%s3 + $0x1a8] sm:$0xff]
  %v187 = vld [vmem:[%s3 + $0x1b0] sm:$0xff]
  %v188 = vld [vmem:[%s3 + $0x1b8] sm:$0xff]
  %v189 = vld [vmem:[%s3 + $0x1c0] sm:$0xff]
  %v190 = vld [vmem:[%s3 + $0x1c8] sm:$0xff]
  %v191 = vld [vmem:[%s3 + $0x1d0] sm:$0xff]
  %v192 = vld [vmem:[%s3 + $0x1d8] sm:$0xff]
  %v193 = vld [vmem:[%s3 + $0x1e0] sm:$0xff]
  %v194 = vld [vmem:[%s3 + $0x1e8] sm:$0xff]
  %v195 = vld [vmem:[%s3 + $0x1f0] sm:$0xff]
  %v196 = vld [vmem:[%s3 + $0x1f8] sm:$0xff]
  %v197 = vld [vmem:[%s3 + $0x200] sm:$0xff]
  %v198 = vld [vmem:[%s3 + $0x208] sm:$0xff]
  %v199 = vld [vmem:[%s3 + $0x210] sm:$0xff]
  %v200 = vld [vmem:[%s3 + $0x218] sm:$0xff]
  %v201 = vld [vmem:[%s3 + $0x220] sm:$0xff]
  %v202 = vld [vmem:[%s3 + $0x228] sm:$0xff]
  %v203 = vld [vmem:[%s3 + $0x230] sm:$0xff]
  %v204 = vld [vmem:[%s3 + $0x238] sm:$0xff]
  %v205 = vld [vmem:[%s3 + $0x240] sm:$0xff]
  %v206 = vld [vmem:[%s3 + $0x248] sm:$0xff]
  %v207 = vld [vmem:[%s3 + $0x250] sm:$0xff]
  %v208 = vld [vmem:[%s3 + $0x258] sm:$0xff]
  %v209 = vld [vmem:[%s3 + $0x260] sm:$0xff]
  %v210 = vld [vmem:[%s3 + $0x268] sm:$0xff]
  %v211 = vld [vmem:[%s3 + $0x270] sm:$0xff]
  %v212 = vld [vmem:[%s3 + $0x278] sm:$0xff]
  %v213 = vld [vmem:[%s3 + $0x280] sm:$0xff]
  %v214 = vld [vmem:[%s3 + $0x288] sm:$0xff]
  %v215 = vld [vmem:[%s3 + $0x290] sm:$0xff]
  %v216 = vld [vmem:[%s3 + $0x298] sm:$0xff]
  %v217 = vld [vmem:[%s3 + $0x2a0] sm:$0xff]
  %v218 = vld [vmem:[%s3 + $0x2a8] sm:$0xff]
  %v219 = vld [vmem:[%s3 + $0x2b0] sm:$0xff]
  %v220 = vld [vmem:[%s3 + $0x2b8] sm:$0xff]
  %v221 = vld [vmem:[%s3 + $0x2c0] sm:$0xff]
  %v222 = vld [vmem:[%s3 + $0x2c8] sm:$0xff]
  %v223 = vld [vmem:[%s3 + $0x2d0] sm:$0xff]
  %v224 = vld [vmem:[%s3 + $0x2d8] sm:$0xff]
  %v225 = vld [vmem:[%s3 + $0x2e0] sm:$0xff]
  %v226 = vld [vmem:[%s3 + $0x2e8] sm:$0xff]
  %v227 = vld [vmem:[%s3 + $0x2f0] sm:$0xff]
  %v228 = vld [vmem:[%s3 + $0x2f8] sm:$0xff]
  %v229 = vld [vmem:[%s3 + $0x300] sm:$0xff]
  %v230 = vld [vmem:[%s3 + $0x308] sm:$0xff]
  %v231 = vld [vmem:[%s3 + $0x310] sm:$0xff]
  %v232 = vld [vmem:[%s3 + $0x318] sm:$0xff]
  %v233 = vld [vmem:[%s3 + $0x320] sm:$0xff]
  %v234 = vld [vmem:[%s3 + $0x328] sm:$0xff]
  %v235 = vld [vmem:[%s3 + $0x330] sm:$0xff]
  %v236 = vld [vmem:[%s3 + $0x338] sm:$0xff]
  %v237 = vld [vmem:[%s3 + $0x340] sm:$0xff]
  %v238 = vld [vmem:[%s3 + $0x348] sm:$0xff]
  %v239 = vld [vmem:[%s3 + $0x350] sm:$0xff]
  %v240 = vld [vmem:[%s3 + $0x358] sm:$0xff]
  %v241 = vld [vmem:[%s3 + $0x360] sm:$0xff]
  %v242 = vld [vmem:[%s3 + $0x368] sm:$0xff]
  %v243 = vld [vmem:[%s3 + $0x370] sm:$0xff]
  %v244 = vld [vmem:[%s3 + $0x378] sm:$0xff]
  %v245 = vld [vmem:[%s3 + $0x380] sm:$0xff]
  %v246 = vld [vmem:[%s3 + $0x388] sm:$0xff]
  %v247 = vld [vmem:[%s3 + $0x390] sm:$0xff]
  %v248 = vld [vmem:[%s3 + $0x398] sm:$0xff]
  %v249 = vld [vmem:[%s3 + $0x3a0] sm:$0xff]
  %v250 = vld [vmem:[%s3 + $0x3a8] sm:$0xff]
  %v251 = vld [vmem:[%s3 + $0x3b0] sm:$0xff]
  %v252 = vld [vmem:[%s3 + $0x3b8] sm:$0xff]
  %v253 = vld [vmem:[%s3 + $0x3c0] sm:$0xff]
  %v254 = vld [vmem:[%s3 + $0x3c8] sm:$0xff]
  %v255 = vld [vmem:[%s3 + $0x3d0] sm:$0xff]
  %v256 = vld [vmem:[%s3 + $0x3d8] sm:$0xff]
  %v257 = vld [vmem:[%s3 + $0x3e0] sm:$0xff]
  %v258 = vld [vmem:[%s3 + $0x3e8] sm:$0xff]
  %v259 = vld [vmem:[%s3 + $0x3f0] sm:$0xff]
  %v260 = vld [vmem:[%s3 + $0x3f8] sm:$0xff]
  %v261 = vld [vmem:[%s3 + $0x400] sm:$0xff]
  %v262 = vld [vmem:[%s3 + $0x408] sm:$0xff]
  %v263 = vld [vmem:[%s3 + $0x410] sm:$0xff]
  %v264 = vld [vmem:[%s3 + $0x418] sm:$0xff]
  %v265 = vld [vmem:[%s3 + $0x420] sm:$0xff]
  %v266 = vld [vmem:[%s3 + $0x428] sm:$0xff]
  %v267 = vld [vmem:[%s3 + $0x430] sm:$0xff]
  %v268 = vld [vmem:[%s3 + $0x438] sm:$0xff]
  %v269 = vld [vmem:[%s3 + $0x440] sm:$0xff]
  %v270 = vld [vmem:[%s3 + $0x448] sm:$0xff]
  %v271 = vld [vmem:[%s3 + $0x450] sm:$0xff]
  %v272 = vld [vmem:[%s3 + $0x458] sm:$0xff]
  %v273 = vld [vmem:[%s3 + $0x460] sm:$0xff]
  %v274 = vld [vmem:[%s3 + $0x468] sm:$0xff]
  %v275 = vld [vmem:[%s3 + $0x470] sm:$0xff]
  %v276 = vld [vmem:[%s3 + $0x478] sm:$0xff]
  %v277 = vld [vmem:[%s3 + $0x480] sm:$0xff]
  %v278 = vld [vmem:[%s3 + $0x488] sm:$0xff]
  %v279 = vld [vmem:[%s3 + $0x490] sm:$0xff]
  %v280 = vld [vmem:[%s3 + $0x498] sm:$0xff]
  %v281 = vld [vmem:[%s3 + $0x4a0] sm:$0xff]
  %v282 = vld [vmem:[%s3 + $0x4a8] sm:$0xff]
  %v283 = vld [vmem:[%s3 + $0x4b0] sm:$0xff]
  %v284 = vld [vmem:[%s3 + $0x4b8] sm:$0xff]
  %v285 = vld [vmem:[%s3 + $0x4c0] sm:$0xff]
  %v286 = vld [vmem:[%s3 + $0x4c8] sm:$0xff]
  %v287 = vld [vmem:[%s3 + $0x4d0] sm:$0xff]
  %v288 = vld [vmem:[%s3 + $0x4d8] sm:$0xff]
  %v289 = vld [vmem:[%s3 + $0x4e0] sm:$0xff]
  %v290 = vld [vmem:[%s3 + $0x4e8] sm:$0xff]
  %v291 = vld [vmem:[%s3 + $0x4f0] sm:$0xff]
  %v292 = vld [vmem:[%s3 + $0x4f8] sm:$0xff]
  %v293 = vld [vmem:[%s3 + $0x500] sm:$0xff]
  %v294 = vld [vmem:[%s3 + $0x508] sm:$0xff]
  %v295 = vld [vmem:[%s3 + $0x510] sm:$0xff]
  %v296 = vld [vmem:[%s3 + $0x518] sm:$0xff]
  %v297 = vld [vmem:[%s3 + $0x520] sm:$0xff]
  %v298 = vld [vmem:[%s3 + $0x528] sm:$0xff]
  %v299 = vld [vmem:[%s3 + $0x530] sm:$0xff]
  %v300 = vld [vmem:[%s3 + $0x538] sm:$0xff]
  %v301 = vld [vmem:[%s3 + $0x540] sm:$0xff]
  %v302 = vld [vmem:[%s3 + $0x548] sm:$0xff]
  %v303 = vld [vmem:[%s3 + $0x550] sm:$0xff]
  %v304 = vld [vmem:[%s3 + $0x558] sm:$0xff]
  %v305 = vld [vmem:[%s3 + $0x560] sm:$0xff]
  %v306 = vld [vmem:[%s3 + $0x568] sm:$0xff]
  %v307 = vld [vmem:[%s3 + $0x570] sm:$0xff]
  %v308 = vld [vmem:[%s3 + $0x578] sm:$0xff]
  %v309 = vld [vmem:[%s3 + $0x580] sm:$0xff]
  %v310 = vld [vmem:[%s3 + $0x588] sm:$0xff]
  %v311 = vld [vmem:[%s3 + $0x590] sm:$0xff]
  %v312 = vld [vmem:[%s3 + $0x598] sm:$0xff]
  %v313 = vld [vmem:[%s3 + $0x5a0] sm:$0xff]
  %v314 = vld [vmem:[%s3 + $0x5a8] sm:$0xff]
  %v315 = vld [vmem:[%s3 + $0x5b0] sm:$0xff]
  %v316 = vld [vmem:[%s3 + $0x5b8] sm:$0xff]
  %v317 = vld [vmem:[%s3 + $0x5c0] sm:$0xff]
  %v318 = vld [vmem:[%s3 + $0x5c8] sm:$0xff]
  %v319 = vld [vmem:[%s3 + $0x5d0] sm:$0xff]
  %v320 = vld [vmem:[%s3 + $0x5d8] sm:$0xff]
  %v321 = vld [vmem:[%s3 + $0x5e0] sm:$0xff]
  %v322 = vld [vmem:[%s3 + $0x5e8] sm:$0xff]
  %v323 = vld [vmem:[%s3 + $0x5f0] sm:$0xff]
  %v324 = vld [vmem:[%s3 + $0x5f8] sm:$0xff]
  %v325 = vld [vmem:[%s3 + $0x600] sm:$0xff]
  %v326 = vld [vmem:[%s3 + $0x608] sm:$0xff]
  %v327 = vld [vmem:[%s3 + $0x610] sm:$0xff]
  %v328 = vld [vmem:[%s3 + $0x618] sm:$0xff]
  %v329 = vld [vmem:[%s3 + $0x620] sm:$0xff]
  %v330 = vld [vmem:[%s3 + $0x628] sm:$0xff]
  %v331 = vld [vmem:[%s3 + $0x630] sm:$0xff]
  %v332 = vld [vmem:[%s3 + $0x638] sm:$0xff]
  %v333 = vld [vmem:[%s3 + $0x640] sm:$0xff]
  %v334 = vld [vmem:[%s3 + $0x648] sm:$0xff]
  %v335 = vld [vmem:[%s3 + $0x650] sm:$0xff]
  %v336 = vld [vmem:[%s3 + $0x658] sm:$0xff]
  %v337 = vld [vmem:[%s3 + $0x660] sm:$0xff]
  %v338 = vld [vmem:[%s3 + $0x668] sm:$0xff]
  %v339 = vld [vmem:[%s3 + $0x670] sm:$0xff]
  %v340 = vld [vmem:[%s3 + $0x678] sm:$0xff]
  %v341 = vld [vmem:[%s3 + $0x680] sm:$0xff]
  %v342 = vld [vmem:[%s3 + $0x688] sm:$0xff]
  %v343 = vld [vmem:[%s4] sm:$0xff]
  %v345 = vperm.slane %v343, 0
  %v346 = vperm.slane %v343, 1
  %v347 = vperm.slane %v343, 2
  %v348 = vperm.slane %v343, 3
  %v349 = vperm.slane %v343, 4
  %v350 = vperm.slane %v343, 5
  %v351 = vperm.slane %v343, 6
  %vm359 = vcmask 916480
  %v361 = vsel %vm359, %v132, 0
  %363 = vmatpush.msra.mxu0 %v238
  %364 = vmatpush.msra.mxu0 %v231
  %365 = vmatpush.msra.mxu0 %v224
  %366 = vmatpush.msra.mxu0 %v217
  %367 = vmatpush.msra.mxu0 %v210
  %368 = vmatpush.msra.mxu0 %v203
  %369 = vmatpush.msra.mxu0 %v196
  %370 = vmatpush.msra.mxu0 %v189
  %371 = vmatpush.msra.mxu0 %v182
  %372 = vmatpush.msra.mxu0 %v175
  %373 = vmatpush.msra.mxu0 %v168
  %374 = vmatpush.msra.mxu0 %v161
  %375 = vmatpush.msra.mxu0 %v154
  %376 = vmatpush.msra.mxu0 %v147
  %377 = vmatpush.msra.mxu0 %v140
  %378 = vmatpush.msra.mxu0 %v133
  %379 = vmatmul.f32.gmra.mxu0 %v131
  %v380 = vpop.f32.mrf.mxu0
  %v381 = vadd.f32 %v345, %v380
  %382 = vdwg.mxu0
  %383 = vmatpush.msra.mxu0 0.0
  %384 = vmatpush.msra.mxu0 0.0
  %385 = vmatpush.msra.mxu0 %v336
  %386 = vmatpush.msra.mxu0 %v329
  %387 = vmatpush.msra.mxu0 %v322
  %388 = vmatpush.msra.mxu0 %v315
  %389 = vmatpush.msra.mxu0 %v308
  %390 = vmatpush.msra.mxu0 %v301
  %391 = vmatpush.msra.mxu0 %v294
  %392 = vmatpush.msra.mxu0 %v287
  %393 = vmatpush.msra.mxu0 %v280
  %394 = vmatpush.msra.mxu0 %v273
  %395 = vmatpush.msra.mxu0 %v266
  %396 = vmatpush.msra.mxu0 %v259
  %397 = vmatpush.msra.mxu0 %v252
  %398 = vmatpush.msra.mxu0 %v245
  %399 = vmatmul.f32.gmra.mxu0 %v361
  %v400 = vpop.f32.mrf.mxu0
  %v401 = vadd.f32 %v381, %v400
  %402 = vdwg.mxu0
  %403 = vmatpush.msra.mxu0 %v239
  %404 = vmatpush.msra.mxu0 %v232
  %405 = vmatpush.msra.mxu0 %v225
  %406 = vmatpush.msra.mxu0 %v218
  %407 = vmatpush.msra.mxu0 %v211
  %408 = vmatpush.msra.mxu0 %v204
  %409 = vmatpush.msra.mxu0 %v197
  %410 = vmatpush.msra.mxu0 %v190
  %411 = vmatpush.msra.mxu0 %v183
  %412 = vmatpush.msra.mxu0 %v176
  %413 = vmatpush.msra.mxu0 %v169
  %414 = vmatpush.msra.mxu0 %v162
  %415 = vmatpush.msra.mxu0 %v155
  %416 = vmatpush.msra.mxu0 %v148
  %417 = vmatpush.msra.mxu0 %v141
  %418 = vmatpush.msra.mxu0 %v134
  %419 = vmatmul.f32.gmra.mxu0 %v131
  %v420 = vpop.f32.mrf.mxu0
  %v421 = vadd.f32 %v346, %v420
  %422 = vdwg.mxu0
  %423 = vmatpush.msra.mxu0 0.0
  %424 = vmatpush.msra.mxu0 0.0
  %425 = vmatpush.msra.mxu0 %v337
  %426 = vmatpush.msra.mxu0 %v330
  %427 = vmatpush.msra.mxu0 %v323
  %428 = vmatpush.msra.mxu0 %v316
  %429 = vmatpush.msra.mxu0 %v309
  %430 = vmatpush.msra.mxu0 %v302
  %431 = vmatpush.msra.mxu0 %v295
  %432 = vmatpush.msra.mxu0 %v288
  %433 = vmatpush.msra.mxu0 %v281
  %434 = vmatpush.msra.mxu0 %v274
  %435 = vmatpush.msra.mxu0 %v267
  %436 = vmatpush.msra.mxu0 %v260
  %437 = vmatpush.msra.mxu0 %v253
  %438 = vmatpush.msra.mxu0 %v246
  %439 = vmatmul.f32.gmra.mxu0 %v361
  %v440 = vpop.f32.mrf.mxu0
  %v441 = vadd.f32 %v421, %v440
  %442 = vdwg.mxu0
  %443 = vmatpush.msra.mxu0 %v240
  %444 = vmatpush.msra.mxu0 %v233
  %445 = vmatpush.msra.mxu0 %v226
  %446 = vmatpush.msra.mxu0 %v219
  %447 = vmatpush.msra.mxu0 %v212
  %448 = vmatpush.msra.mxu0 %v205
  %449 = vmatpush.msra.mxu0 %v198
  %450 = vmatpush.msra.mxu0 %v191
  %451 = vmatpush.msra.mxu0 %v184
  %452 = vmatpush.msra.mxu0 %v177
  %453 = vmatpush.msra.mxu0 %v170
  %454 = vmatpush.msra.mxu0 %v163
  %455 = vmatpush.msra.mxu0 %v156
  %456 = vmatpush.msra.mxu0 %v149
  %457 = vmatpush.msra.mxu0 %v142
  %458 = vmatpush.msra.mxu0 %v135
  %459 = vmatmul.f32.gmra.mxu0 %v131
  %v460 = vpop.f32.mrf.mxu0
  %v461 = vadd.f32 %v347, %v460
  %462 = vdwg.mxu0
  %463 = vmatpush.msra.mxu0 0.0
  %464 = vmatpush.msra.mxu0 0.0
  %465 = vmatpush.msra.mxu0 %v338
  %466 = vmatpush.msra.mxu0 %v331
  %467 = vmatpush.msra.mxu0 %v324
  %468 = vmatpush.msra.mxu0 %v317
  %469 = vmatpush.msra.mxu0 %v310
  %470 = vmatpush.msra.mxu0 %v303
  %471 = vmatpush.msra.mxu0 %v296
  %472 = vmatpush.msra.mxu0 %v289
  %473 = vmatpush.msra.mxu0 %v282
  %474 = vmatpush.msra.mxu0 %v275
  %475 = vmatpush.msra.mxu0 %v268
  %476 = vmatpush.msra.mxu0 %v261
  %477 = vmatpush.msra.mxu0 %v254
  %478 = vmatpush.msra.mxu0 %v247
  %479 = vmatmul.f32.gmra.mxu0 %v361
  %v480 = vpop.f32.mrf.mxu0
  %v481 = vadd.f32 %v461, %v480
  %482 = vdwg.mxu0
  %483 = vmatpush.msra.mxu0 %v241
  %484 = vmatpush.msra.mxu0 %v234
  %485 = vmatpush.msra.mxu0 %v227
  %486 = vmatpush.msra.mxu0 %v220
  %487 = vmatpush.msra.mxu0 %v213
  %488 = vmatpush.msra.mxu0 %v206
  %489 = vmatpush.msra.mxu0 %v199
  %490 = vmatpush.msra.mxu0 %v192
  %491 = vmatpush.msra.mxu0 %v185
  %492 = vmatpush.msra.mxu0 %v178
  %493 = vmatpush.msra.mxu0 %v171
  %494 = vmatpush.msra.mxu0 %v164
  %495 = vmatpush.msra.mxu0 %v157
  %496 = vmatpush.msra.mxu0 %v150
  %497 = vmatpush.msra.mxu0 %v143
  %498 = vmatpush.msra.mxu0 %v136
  %499 = vmatmul.f32.gmra.mxu0 %v131
  %v500 = vpop.f32.mrf.mxu0
  %v501 = vadd.f32 %v348, %v500
  %502 = vdwg.mxu0
  %503 = vmatpush.msra.mxu0 0.0
  %504 = vmatpush.msra.mxu0 0.0
  %505 = vmatpush.msra.mxu0 %v339
  %506 = vmatpush.msra.mxu0 %v332
  %507 = vmatpush.msra.mxu0 %v325
  %508 = vmatpush.msra.mxu0 %v318
  %509 = vmatpush.msra.mxu0 %v311
  %510 = vmatpush.msra.mxu0 %v304
  %511 = vmatpush.msra.mxu0 %v297
  %512 = vmatpush.msra.mxu0 %v290
  %513 = vmatpush.msra.mxu0 %v283
  %514 = vmatpush.msra.mxu0 %v276
  %515 = vmatpush.msra.mxu0 %v269
  %516 = vmatpush.msra.mxu0 %v262
  %517 = vmatpush.msra.mxu0 %v255
  %518 = vmatpush.msra.mxu0 %v248
  %519 = vmatmul.f32.gmra.mxu0 %v361
  %v520 = vpop.f32.mrf.mxu0
  %v521 = vadd.f32 %v501, %v520
  %522 = vdwg.mxu0
  %523 = vmatpush.msra.mxu0 %v242
  %524 = vmatpush.msra.mxu0 %v235
  %525 = vmatpush.msra.mxu0 %v228
  %526 = vmatpush.msra.mxu0 %v221
  %527 = vmatpush.msra.mxu0 %v214
  %528 = vmatpush.msra.mxu0 %v207
  %529 = vmatpush.msra.mxu0 %v200
  %530 = vmatpush.msra.mxu0 %v193
  %531 = vmatpush.msra.mxu0 %v186
  %532 = vmatpush.msra.mxu0 %v179
  %533 = vmatpush.msra.mxu0 %v172
  %534 = vmatpush.msra.mxu0 %v165
  %535 = vmatpush.msra.mxu0 %v158
  %536 = vmatpush.msra.mxu0 %v151
  %537 = vmatpush.msra.mxu0 %v144
  %538 = vmatpush.msra.mxu0 %v137
  %539 = vmatmul.f32.gmra.mxu0 %v131
  %v540 = vpop.f32.mrf.mxu0
  %v541 = vadd.f32 %v349, %v540
  %542 = vdwg.mxu0
  %543 = vmatpush.msra.mxu0 0.0
  %544 = vmatpush.msra.mxu0 0.0
  %545 = vmatpush.msra.mxu0 %v340
  %546 = vmatpush.msra.mxu0 %v333
  %547 = vmatpush.msra.mxu0 %v326
  %548 = vmatpush.msra.mxu0 %v319
  %549 = vmatpush.msra.mxu0 %v312
  %550 = vmatpush.msra.mxu0 %v305
  %551 = vmatpush.msra.mxu0 %v298
  %552 = vmatpush.msra.mxu0 %v291
  %553 = vmatpush.msra.mxu0 %v284
  %554 = vmatpush.msra.mxu0 %v277
  %555 = vmatpush.msra.mxu0 %v270
  %556 = vmatpush.msra.mxu0 %v263
  %557 = vmatpush.msra.mxu0 %v256
  %558 = vmatpush.msra.mxu0 %v249
  %559 = vmatmul.f32.gmra.mxu0 %v361
  %v560 = vpop.f32.mrf.mxu0
  %v561 = vadd.f32 %v541, %v560
  %562 = vdwg.mxu0
  %563 = vmatpush.msra.mxu0 %v243
  %564 = vmatpush.msra.mxu0 %v236
  %565 = vmatpush.msra.mxu0 %v229
  %566 = vmatpush.msra.mxu0 %v222
  %567 = vmatpush.msra.mxu0 %v215
  %568 = vmatpush.msra.mxu0 %v208
  %569 = vmatpush.msra.mxu0 %v201
  %570 = vmatpush.msra.mxu0 %v194
  %571 = vmatpush.msra.mxu0 %v187
  %572 = vmatpush.msra.mxu0 %v180
  %573 = vmatpush.msra.mxu0 %v173
  %574 = vmatpush.msra.mxu0 %v166
  %575 = vmatpush.msra.mxu0 %v159
  %576 = vmatpush.msra.mxu0 %v152
  %577 = vmatpush.msra.mxu0 %v145
  %578 = vmatpush.msra.mxu0 %v138
  %579 = vmatmul.f32.gmra.mxu0 %v131
  %v580 = vpop.f32.mrf.mxu0
  %v581 = vadd.f32 %v350, %v580
  %582 = vdwg.mxu0
  %583 = vmatpush.msra.mxu0 0.0
  %584 = vmatpush.msra.mxu0 0.0
  %585 = vmatpush.msra.mxu0 %v341
  %586 = vmatpush.msra.mxu0 %v334
  %587 = vmatpush.msra.mxu0 %v327
  %588 = vmatpush.msra.mxu0 %v320
  %589 = vmatpush.msra.mxu0 %v313
  %590 = vmatpush.msra.mxu0 %v306
  %591 = vmatpush.msra.mxu0 %v299
  %592 = vmatpush.msra.mxu0 %v292
  %593 = vmatpush.msra.mxu0 %v285
  %594 = vmatpush.msra.mxu0 %v278
  %595 = vmatpush.msra.mxu0 %v271
  %596 = vmatpush.msra.mxu0 %v264
  %597 = vmatpush.msra.mxu0 %v257
  %598 = vmatpush.msra.mxu0 %v250
  %599 = vmatmul.f32.gmra.mxu0 %v361
  %v600 = vpop.f32.mrf.mxu0
  %v601 = vadd.f32 %v581, %v600
  %602 = vdwg.mxu0
  %603 = vmatpush.msra.mxu0 %v244
  %604 = vmatpush.msra.mxu0 %v237
  %605 = vmatpush.msra.mxu0 %v230
  %606 = vmatpush.msra.mxu0 %v223
  %607 = vmatpush.msra.mxu0 %v216
  %608 = vmatpush.msra.mxu0 %v209
  %609 = vmatpush.msra.mxu0 %v202
  %610 = vmatpush.msra.mxu0 %v195
  %611 = vmatpush.msra.mxu0 %v188
  %612 = vmatpush.msra.mxu0 %v181
  %613 = vmatpush.msra.mxu0 %v174
  %614 = vmatpush.msra.mxu0 %v167
  %615 = vmatpush.msra.mxu0 %v160
  %616 = vmatpush.msra.mxu0 %v153
  %617 = vmatpush.msra.mxu0 %v146
  %618 = vmatpush.msra.mxu0 %v139
  %619 = vmatmul.f32.gmra.mxu0 %v131
  %v620 = vpop.f32.mrf.mxu0
  %v621 = vadd.f32 %v351, %v620
  %622 = vdwg.mxu0
  %623 = vmatpush.msra.mxu0 0.0
  %624 = vmatpush.msra.mxu0 0.0
  %625 = vmatpush.msra.mxu0 %v342
  %626 = vmatpush.msra.mxu0 %v335
  %627 = vmatpush.msra.mxu0 %v328
  %628 = vmatpush.msra.mxu0 %v321
  %629 = vmatpush.msra.mxu0 %v314
  %630 = vmatpush.msra.mxu0 %v307
  %631 = vmatpush.msra.mxu0 %v300
  %632 = vmatpush.msra.mxu0 %v293
  %633 = vmatpush.msra.mxu0 %v286
  %634 = vmatpush.msra.mxu0 %v279
  %635 = vmatpush.msra.mxu0 %v272
  %636 = vmatpush.msra.mxu0 %v265
  %637 = vmatpush.msra.mxu0 %v258
  %638 = vmatpush.msra.mxu0 %v251
  %639 = vmatmul.f32.gmra.mxu0 %v361
  %v640 = vpop.f32.mrf.mxu0
  %v641 = vadd.f32 %v621, %v640
  %642 = vdwg.mxu0
  %v643 = vxor.u32 %v401, 2147483648
  %v644 = vxor.u32 %v441, 2147483648
  %v645 = vxor.u32 %v481, 2147483648
  %v646 = vxor.u32 %v521, 2147483648
  %v647 = vxor.u32 %v561, 2147483648
  %v648 = vxor.u32 %v601, 2147483648
  %v649 = vxor.u32 %v641, 2147483648
  %v650 = vmul.f32 %v643, 1.442695
  %v651 = vpow.pop %v650
  %v652 = vmul.f32 %v644, 1.442695
  %v653 = vpow.pop %v652
  %v654 = vmul.f32 %v645, 1.442695
  %v655 = vpow.pop %v654
  %v656 = vmul.f32 %v646, 1.442695
  %v657 = vpow.pop %v656
  %v658 = vmul.f32 %v647, 1.442695
  %v659 = vpow.pop %v658
  %v660 = vmul.f32 %v648, 1.442695
  %v661 = vpow.pop %v660
  %v662 = vmul.f32 %v649, 1.442695
  %v663 = vpow.pop %v662
  %v664 = vadd.f32 %v651, 1.0
  %v665 = vadd.f32 %v653, 1.0
  %v666 = vadd.f32 %v655, 1.0
  %v667 = vadd.f32 %v657, 1.0
  %v668 = vadd.f32 %v659, 1.0
  %v669 = vadd.f32 %v661, 1.0
  %v670 = vadd.f32 %v663, 1.0
  %v671 = vrcp.pop %v664
  %v672 = vmul.f32 %v664, %v671
  %v673 = vsub.f32 1.0, %v672
  %v674 = vmul.f32 %v671, %v673
  %v675 = vadd.f32 %v671, %v674
  %vm676 = vweird.f32 %v664
  %vm677 = vweird.f32 %v671
  %vm678 = vmor %vm676, %vm677
  %v679 = vsel %vm678, %v671, %v675
  %v680 = vand.u32 2147483647, %v664
  %vm681 = vcmp.eq.f32.partialorder %v680, 8.507059e+37
  %v682 = vand.u32 %v664, 2147483648
  %v683 = vor.u32 1.1754944e-38, %v682
  %v684 = vsel %vm681, %v683, %v679
  %v685 = vmul.f32 1.0, %v684
  %v686 = vrcp.pop %v665
  %v687 = vmul.f32 %v665, %v686
  %v688 = vsub.f32 1.0, %v687
  %v689 = vmul.f32 %v686, %v688
  %v690 = vadd.f32 %v686, %v689
  %vm691 = vweird.f32 %v665
  %vm692 = vweird.f32 %v686
  %vm693 = vmor %vm691, %vm692
  %v694 = vsel %vm693, %v686, %v690
  %v695 = vand.u32 2147483647, %v665
  %vm696 = vcmp.eq.f32.partialorder %v695, 8.507059e+37
  %v697 = vand.u32 %v665, 2147483648
  %v698 = vor.u32 1.1754944e-38, %v697
  %v699 = vsel %vm696, %v698, %v694
  %v700 = vmul.f32 1.0, %v699
  %v701 = vrcp.pop %v666
  %v702 = vmul.f32 %v666, %v701
  %v703 = vsub.f32 1.0, %v702
  %v704 = vmul.f32 %v701, %v703
  %v705 = vadd.f32 %v701, %v704
  %vm706 = vweird.f32 %v666
  %vm707 = vweird.f32 %v701
  %vm708 = vmor %vm706, %vm707
  %v709 = vsel %vm708, %v701, %v705
  %v710 = vand.u32 2147483647, %v666
  %vm711 = vcmp.eq.f32.partialorder %v710, 8.507059e+37
  %v712 = vand.u32 %v666, 2147483648
  %v713 = vor.u32 1.1754944e-38, %v712
  %v714 = vsel %vm711, %v713, %v709
  %v715 = vmul.f32 1.0, %v714
  %v716 = vrcp.pop %v667
  %v717 = vmul.f32 %v667, %v716
  %v718 = vsub.f32 1.0, %v717
  %v719 = vmul.f32 %v716, %v718
  %v720 = vadd.f32 %v716, %v719
  %vm721 = vweird.f32 %v667
  %vm722 = vweird.f32 %v716
  %vm723 = vmor %vm721, %vm722
  %v724 = vsel %vm723, %v716, %v720
  %v725 = vand.u32 2147483647, %v667
  %vm726 = vcmp.eq.f32.partialorder %v725, 8.507059e+37
  %v727 = vand.u32 %v667, 2147483648
  %v728 = vor.u32 1.1754944e-38, %v727
  %v729 = vsel %vm726, %v728, %v724
  %v730 = vmul.f32 1.0, %v729
  %v731 = vrcp.pop %v668
  %v732 = vmul.f32 %v668, %v731
  %v733 = vsub.f32 1.0, %v732
  %v734 = vmul.f32 %v731, %v733
  %v735 = vadd.f32 %v731, %v734
  %vm736 = vweird.f32 %v668
  %vm737 = vweird.f32 %v731
  %vm738 = vmor %vm736, %vm737
  %v739 = vsel %vm738, %v731, %v735
  %v740 = vand.u32 2147483647, %v668
  %vm741 = vcmp.eq.f32.partialorder %v740, 8.507059e+37
  %v742 = vand.u32 %v668, 2147483648
  %v743 = vor.u32 1.1754944e-38, %v742
  %v744 = vsel %vm741, %v743, %v739
  %v745 = vmul.f32 1.0, %v744
  %v746 = vrcp.pop %v669
  %v747 = vmul.f32 %v669, %v746
  %v748 = vsub.f32 1.0, %v747
  %v749 = vmul.f32 %v746, %v748
  %v750 = vadd.f32 %v746, %v749
  %vm751 = vweird.f32 %v669
  %vm752 = vweird.f32 %v746
  %vm753 = vmor %vm751, %vm752
  %v754 = vsel %vm753, %v746, %v750
  %v755 = vand.u32 2147483647, %v669
  %vm756 = vcmp.eq.f32.partialorder %v755, 8.507059e+37
  %v757 = vand.u32 %v669, 2147483648
  %v758 = vor.u32 1.1754944e-38, %v757
  %v759 = vsel %vm756, %v758, %v754
  %v760 = vmul.f32 1.0, %v759
  %v761 = vrcp.pop %v670
  %v762 = vmul.f32 %v670, %v761
  %v763 = vsub.f32 1.0, %v762
  %v764 = vmul.f32 %v761, %v763
  %v765 = vadd.f32 %v761, %v764
  %vm766 = vweird.f32 %v670
  %vm767 = vweird.f32 %v761
  %vm768 = vmor %vm766, %vm767
  %v769 = vsel %vm768, %v761, %v765
  %v770 = vand.u32 2147483647, %v670
  %vm771 = vcmp.eq.f32.partialorder %v770, 8.507059e+37
  %v772 = vand.u32 %v670, 2147483648
  %v773 = vor.u32 1.1754944e-38, %v772
  %v774 = vsel %vm771, %v773, %v769
  %v775 = vmul.f32 1.0, %v774
  %v776 = vmul.f32 %v401, %v685
  %v777 = vmul.f32 %v441, %v700
  %v778 = vmul.f32 %v481, %v715
  %v779 = vmul.f32 %v521, %v730
  %v780 = vmul.f32 %v561, %v745
  %v781 = vmul.f32 %v601, %v760
  %v782 = vmul.f32 %v641, %v775
  %v783 = vld [vmem:[%s5] sm:$0xff]
  %v784 = vld [vmem:[%s5 + $0x8] sm:$0xff]
  %v785 = vld [vmem:[%s5 + $0x10] sm:$0xff]
  %v786 = vld [vmem:[%s5 + $0x18] sm:$0xff]
  %v787 = vld [vmem:[%s5 + $0x20] sm:$0xff]
  %v788 = vld [vmem:[%s5 + $0x28] sm:$0xff]
  %v789 = vld [vmem:[%s5 + $0x30] sm:$0xff]
  %v790 = vld [vmem:[%s5 + $0x38] sm:$0xff]
  %v791 = vld [vmem:[%s5 + $0x40] sm:$0xff]
  %v792 = vld [vmem:[%s5 + $0x48] sm:$0xff]
  %v793 = vld [vmem:[%s5 + $0x50] sm:$0xff]
  %v794 = vld [vmem:[%s5 + $0x58] sm:$0xff]
  %v795 = vld [vmem:[%s5 + $0x60] sm:$0xff]
  %v796 = vld [vmem:[%s5 + $0x68] sm:$0xff]
  %v797 = vld [vmem:[%s5 + $0x70] sm:$0xff]
  %v798 = vld [vmem:[%s5 + $0x78] sm:$0xff]
  %v799 = vld [vmem:[%s5 + $0x80] sm:$0xff]
  %v800 = vld [vmem:[%s5 + $0x88] sm:$0xff]
  %v801 = vld [vmem:[%s5 + $0x90] sm:$0xff]
  %v802 = vld [vmem:[%s5 + $0x98] sm:$0xff]
  %v803 = vld [vmem:[%s5 + $0xa0] sm:$0xff]
  %v804 = vld [vmem:[%s5 + $0xa8] sm:$0xff]
  %v805 = vld [vmem:[%s5 + $0xb0] sm:$0xff]
  %v806 = vld [vmem:[%s5 + $0xb8] sm:$0xff]
  %v807 = vld [vmem:[%s5 + $0xc0] sm:$0xff]
  %v808 = vld [vmem:[%s5 + $0xc8] sm:$0xff]
  %v809 = vld [vmem:[%s5 + $0xd0] sm:$0xff]
  %v810 = vld [vmem:[%s5 + $0xd8] sm:$0xff]
  %v811 = vld [vmem:[%s5 + $0xe0] sm:$0xff]
  %v812 = vld [vmem:[%s5 + $0xe8] sm:$0xff]
  %v813 = vld [vmem:[%s5 + $0xf0] sm:$0xff]
  %v814 = vld [vmem:[%s5 + $0xf8] sm:$0xff]
  %v815 = vld [vmem:[%s5 + $0x100] sm:$0xff]
  %v816 = vld [vmem:[%s5 + $0x108] sm:$0xff]
  %v817 = vld [vmem:[%s5 + $0x110] sm:$0xff]
  %v818 = vld [vmem:[%s5 + $0x118] sm:$0xff]
  %v819 = vld [vmem:[%s5 + $0x120] sm:$0xff]
  %v820 = vld [vmem:[%s5 + $0x128] sm:$0xff]
  %v821 = vld [vmem:[%s5 + $0x130] sm:$0xff]
  %v822 = vld [vmem:[%s5 + $0x138] sm:$0xff]
  %v823 = vld [vmem:[%s5 + $0x140] sm:$0xff]
  %v824 = vld [vmem:[%s5 + $0x148] sm:$0xff]
  %v825 = vld [vmem:[%s5 + $0x150] sm:$0xff]
  %v826 = vld [vmem:[%s5 + $0x158] sm:$0xff]
  %v827 = vld [vmem:[%s5 + $0x160] sm:$0xff]
  %v828 = vld [vmem:[%s5 + $0x168] sm:$0xff]
  %v829 = vld [vmem:[%s5 + $0x170] sm:$0xff]
  %v830 = vld [vmem:[%s5 + $0x178] sm:$0xff]
  %v831 = vld [vmem:[%s5 + $0x180] sm:$0xff]
  %v832 = vld [vmem:[%s5 + $0x188] sm:$0xff]
  %v833 = vld [vmem:[%s5 + $0x190] sm:$0xff]
  %v834 = vld [vmem:[%s5 + $0x198] sm:$0xff]
  %v835 = vld [vmem:[%s5 + $0x1a0] sm:$0xff]
  %v836 = vld [vmem:[%s5 + $0x1a8] sm:$0xff]
  %v837 = vld [vmem:[%s5 + $0x1b0] sm:$0xff]
  %v838 = vld [vmem:[%s5 + $0x1b8] sm:$0xff]
  %v839 = vld [vmem:[%s5 + $0x1c0] sm:$0xff]
  %v840 = vld [vmem:[%s5 + $0x1c8] sm:$0xff]
  %v841 = vld [vmem:[%s5 + $0x1d0] sm:$0xff]
  %v842 = vld [vmem:[%s5 + $0x1d8] sm:$0xff]
  %v843 = vld [vmem:[%s5 + $0x1e0] sm:$0xff]
  %v844 = vld [vmem:[%s5 + $0x1e8] sm:$0xff]
  %v845 = vld [vmem:[%s5 + $0x1f0] sm:$0xff]
  %v846 = vld [vmem:[%s5 + $0x1f8] sm:$0xff]
  %v847 = vld [vmem:[%s5 + $0x200] sm:$0xff]
  %v848 = vld [vmem:[%s5 + $0x208] sm:$0xff]
  %v849 = vld [vmem:[%s5 + $0x210] sm:$0xff]
  %v850 = vld [vmem:[%s5 + $0x218] sm:$0xff]
  %v851 = vld [vmem:[%s5 + $0x220] sm:$0xff]
  %v852 = vld [vmem:[%s5 + $0x228] sm:$0xff]
  %v853 = vld [vmem:[%s5 + $0x230] sm:$0xff]
  %v854 = vld [vmem:[%s5 + $0x238] sm:$0xff]
  %v855 = vld [vmem:[%s5 + $0x240] sm:$0xff]
  %v856 = vld [vmem:[%s5 + $0x248] sm:$0xff]
  %v857 = vld [vmem:[%s5 + $0x250] sm:$0xff]
  %v858 = vld [vmem:[%s5 + $0x258] sm:$0xff]
  %v859 = vld [vmem:[%s5 + $0x260] sm:$0xff]
  %v860 = vld [vmem:[%s5 + $0x268] sm:$0xff]
  %v861 = vld [vmem:[%s5 + $0x270] sm:$0xff]
  %v862 = vld [vmem:[%s5 + $0x278] sm:$0xff]
  %v863 = vld [vmem:[%s5 + $0x280] sm:$0xff]
  %v864 = vld [vmem:[%s5 + $0x288] sm:$0xff]
  %v865 = vld [vmem:[%s5 + $0x290] sm:$0xff]
  %v866 = vld [vmem:[%s5 + $0x298] sm:$0xff]
  %v867 = vld [vmem:[%s5 + $0x2a0] sm:$0xff]
  %v868 = vld [vmem:[%s5 + $0x2a8] sm:$0xff]
  %v869 = vld [vmem:[%s5 + $0x2b0] sm:$0xff]
  %v870 = vld [vmem:[%s5 + $0x2b8] sm:$0xff]
  %v871 = vld [vmem:[%s5 + $0x2c0] sm:$0xff]
  %v872 = vld [vmem:[%s5 + $0x2c8] sm:$0xff]
  %v873 = vld [vmem:[%s5 + $0x2d0] sm:$0xff]
  %v874 = vld [vmem:[%s5 + $0x2d8] sm:$0xff]
  %v875 = vld [vmem:[%s5 + $0x2e0] sm:$0xff]
  %v876 = vld [vmem:[%s5 + $0x2e8] sm:$0xff]
  %v877 = vld [vmem:[%s5 + $0x2f0] sm:$0xff]
  %v878 = vld [vmem:[%s5 + $0x2f8] sm:$0xff]
  %v879 = vld [vmem:[%s5 + $0x300] sm:$0xff]
  %v880 = vld [vmem:[%s5 + $0x308] sm:$0xff]
  %v881 = vld [vmem:[%s5 + $0x310] sm:$0xff]
  %v882 = vld [vmem:[%s5 + $0x318] sm:$0xff]
  %v883 = vld [vmem:[%s5 + $0x320] sm:$0xff]
  %v884 = vld [vmem:[%s5 + $0x328] sm:$0xff]
  %v885 = vld [vmem:[%s5 + $0x330] sm:$0xff]
  %v886 = vld [vmem:[%s5 + $0x338] sm:$0xff]
  %v887 = vld [vmem:[%s5 + $0x340] sm:$0xff]
  %v888 = vld [vmem:[%s5 + $0x348] sm:$0xff]
  %v889 = vld [vmem:[%s5 + $0x350] sm:$0xff]
  %v890 = vld [vmem:[%s5 + $0x358] sm:$0xff]
  %v891 = vld [vmem:[%s5 + $0x360] sm:$0xff]
  %v892 = vld [vmem:[%s5 + $0x368] sm:$0xff]
  %v893 = vld [vmem:[%s5 + $0x370] sm:$0xff]
  %v894 = vld [vmem:[%s5 + $0x378] sm:$0xff]
  %v895 = vld [vmem:[%s5 + $0x380] sm:$0xff]
  %v896 = vld [vmem:[%s5 + $0x388] sm:$0xff]
  %v897 = vld [vmem:[%s5 + $0x390] sm:$0xff]
  %v898 = vld [vmem:[%s5 + $0x398] sm:$0xff]
  %v899 = vld [vmem:[%s5 + $0x3a0] sm:$0xff]
  %v900 = vld [vmem:[%s5 + $0x3a8] sm:$0xff]
  %v901 = vld [vmem:[%s5 + $0x3b0] sm:$0xff]
  %v902 = vld [vmem:[%s5 + $0x3b8] sm:$0xff]
  %v903 = vld [vmem:[%s5 + $0x3c0] sm:$0xff]
  %v904 = vld [vmem:[%s5 + $0x3c8] sm:$0xff]
  %v905 = vld [vmem:[%s5 + $0x3d0] sm:$0xff]
  %v906 = vld [vmem:[%s5 + $0x3d8] sm:$0xff]
  %v907 = vld [vmem:[%s5 + $0x3e0] sm:$0xff]
  %v908 = vld [vmem:[%s5 + $0x3e8] sm:$0xff]
  %v909 = vld [vmem:[%s5 + $0x3f0] sm:$0xff]
  %v910 = vld [vmem:[%s5 + $0x3f8] sm:$0xff]
  %v911 = vld [vmem:[%s5 + $0x400] sm:$0xff]
  %v912 = vld [vmem:[%s5 + $0x408] sm:$0xff]
  %v913 = vld [vmem:[%s5 + $0x410] sm:$0xff]
  %v914 = vld [vmem:[%s5 + $0x418] sm:$0xff]
  %v915 = vld [vmem:[%s5 + $0x420] sm:$0xff]
  %v916 = vld [vmem:[%s5 + $0x428] sm:$0xff]
  %v917 = vld [vmem:[%s5 + $0x430] sm:$0xff]
  %v918 = vld [vmem:[%s5 + $0x438] sm:$0xff]
  %v919 = vld [vmem:[%s5 + $0x440] sm:$0xff]
  %v920 = vld [vmem:[%s5 + $0x448] sm:$0xff]
  %v921 = vld [vmem:[%s5 + $0x450] sm:$0xff]
  %v922 = vld [vmem:[%s5 + $0x458] sm:$0xff]
  %v923 = vld [vmem:[%s5 + $0x460] sm:$0xff]
  %v924 = vld [vmem:[%s5 + $0x468] sm:$0xff]
  %v925 = vld [vmem:[%s5 + $0x470] sm:$0xff]
  %v926 = vld [vmem:[%s5 + $0x478] sm:$0xff]
  %v927 = vld [vmem:[%s5 + $0x480] sm:$0xff]
  %v928 = vld [vmem:[%s5 + $0x488] sm:$0xff]
  %v929 = vld [vmem:[%s5 + $0x490] sm:$0xff]
  %v930 = vld [vmem:[%s5 + $0x498] sm:$0xff]
  %v931 = vld [vmem:[%s5 + $0x4a0] sm:$0xff]
  %v932 = vld [vmem:[%s5 + $0x4a8] sm:$0xff]
  %v933 = vld [vmem:[%s5 + $0x4b0] sm:$0xff]
  %v934 = vld [vmem:[%s5 + $0x4b8] sm:$0xff]
  %v935 = vld [vmem:[%s5 + $0x4c0] sm:$0xff]
  %v936 = vld [vmem:[%s5 + $0x4c8] sm:$0xff]
  %v937 = vld [vmem:[%s5 + $0x4d0] sm:$0xff]
  %v938 = vld [vmem:[%s5 + $0x4d8] sm:$0xff]
  %v939 = vld [vmem:[%s5 + $0x4e0] sm:$0xff]
  %v940 = vld [vmem:[%s5 + $0x4e8] sm:$0xff]
  %v941 = vld [vmem:[%s5 + $0x4f0] sm:$0xff]
  %v942 = vld [vmem:[%s5 + $0x4f8] sm:$0xff]
  %v943 = vld [vmem:[%s5 + $0x500] sm:$0xff]
  %v944 = vld [vmem:[%s5 + $0x508] sm:$0xff]
  %v945 = vld [vmem:[%s5 + $0x510] sm:$0xff]
  %v946 = vld [vmem:[%s5 + $0x518] sm:$0xff]
  %v947 = vld [vmem:[%s5 + $0x520] sm:$0xff]
  %v948 = vld [vmem:[%s5 + $0x528] sm:$0xff]
  %v949 = vld [vmem:[%s5 + $0x530] sm:$0xff]
  %v950 = vld [vmem:[%s5 + $0x538] sm:$0xff]
  %v951 = vld [vmem:[%s5 + $0x540] sm:$0xff]
  %v952 = vld [vmem:[%s5 + $0x548] sm:$0xff]
  %v953 = vld [vmem:[%s5 + $0x550] sm:$0xff]
  %v954 = vld [vmem:[%s5 + $0x558] sm:$0xff]
  %v955 = vld [vmem:[%s5 + $0x560] sm:$0xff]
  %v956 = vld [vmem:[%s5 + $0x568] sm:$0xff]
  %v957 = vld [vmem:[%s5 + $0x570] sm:$0xff]
  %v958 = vld [vmem:[%s5 + $0x578] sm:$0xff]
  %v959 = vld [vmem:[%s5 + $0x580] sm:$0xff]
  %v960 = vld [vmem:[%s5 + $0x588] sm:$0xff]
  %v961 = vld [vmem:[%s5 + $0x590] sm:$0xff]
  %v962 = vld [vmem:[%s5 + $0x598] sm:$0xff]
  %v963 = vld [vmem:[%s5 + $0x5a0] sm:$0xff]
  %v964 = vld [vmem:[%s5 + $0x5a8] sm:$0xff]
  %v965 = vld [vmem:[%s5 + $0x5b0] sm:$0xff]
  %v966 = vld [vmem:[%s5 + $0x5b8] sm:$0xff]
  %v967 = vld [vmem:[%s5 + $0x5c0] sm:$0xff]
  %v968 = vld [vmem:[%s5 + $0x5c8] sm:$0xff]
  %v969 = vld [vmem:[%s5 + $0x5d0] sm:$0xff]
  %v970 = vld [vmem:[%s5 + $0x5d8] sm:$0xff]
  %v971 = vld [vmem:[%s5 + $0x5e0] sm:$0xff]
  %v972 = vld [vmem:[%s5 + $0x5e8] sm:$0xff]
  %v973 = vld [vmem:[%s5 + $0x5f0] sm:$0xff]
  %v974 = vld [vmem:[%s5 + $0x5f8] sm:$0xff]
  %v975 = vld [vmem:[%s5 + $0x600] sm:$0xff]
  %v976 = vld [vmem:[%s5 + $0x608] sm:$0xff]
  %v977 = vld [vmem:[%s5 + $0x610] sm:$0xff]
  %v978 = vld [vmem:[%s5 + $0x618] sm:$0xff]
  %v979 = vld [vmem:[%s5 + $0x620] sm:$0xff]
  %v980 = vld [vmem:[%s5 + $0x628] sm:$0xff]
  %v981 = vld [vmem:[%s5 + $0x630] sm:$0xff]
  %v982 = vld [vmem:[%s5 + $0x638] sm:$0xff]
  %v983 = vld [vmem:[%s5 + $0x640] sm:$0xff]
  %v984 = vld [vmem:[%s5 + $0x648] sm:$0xff]
  %v985 = vld [vmem:[%s5 + $0x650] sm:$0xff]
  %v986 = vld [vmem:[%s5 + $0x658] sm:$0xff]
  %v987 = vld [vmem:[%s5 + $0x660] sm:$0xff]
  %v988 = vld [vmem:[%s5 + $0x668] sm:$0xff]
  %v989 = vld [vmem:[%s5 + $0x670] sm:$0xff]
  %v990 = vld [vmem:[%s5 + $0x678] sm:$0xff]
  %v991 = vld [vmem:[%s5 + $0x680] sm:$0xff]
  %v992 = vld [vmem:[%s5 + $0x688] sm:$0xff]
  %v993 = vld [vmem:[%s5 + $0x690] sm:$0xff]
  %v994 = vld [vmem:[%s5 + $0x698] sm:$0xff]
  %v995 = vld [vmem:[%s5 + $0x6a0] sm:$0xff]
  %v996 = vld [vmem:[%s5 + $0x6a8] sm:$0xff]
  %v997 = vld [vmem:[%s5 + $0x6b0] sm:$0xff]
  %v998 = vld [vmem:[%s5 + $0x6b8] sm:$0xff]
  %v999 = vld [vmem:[%s5 + $0x6c0] sm:$0xff]
  %v1000 = vld [vmem:[%s5 + $0x6c8] sm:$0xff]
  %v1001 = vld [vmem:[%s5 + $0x6d0] sm:$0xff]
  %v1002 = vld [vmem:[%s5 + $0x6d8] sm:$0xff]
  %v1003 = vld [vmem:[%s5 + $0x6e0] sm:$0xff]
  %v1004 = vld [vmem:[%s5 + $0x6e8] sm:$0xff]
  %v1005 = vld [vmem:[%s5 + $0x6f0] sm:$0xff]
  %v1006 = vld [vmem:[%s5 + $0x6f8] sm:$0xff]
  %v1007 = vld [vmem:[%s5 + $0x700] sm:$0xff]
  %v1008 = vld [vmem:[%s5 + $0x708] sm:$0xff]
  %v1009 = vld [vmem:[%s5 + $0x710] sm:$0xff]
  %v1010 = vld [vmem:[%s5 + $0x718] sm:$0xff]
  %v1011 = vld [vmem:[%s5 + $0x720] sm:$0xff]
  %v1012 = vld [vmem:[%s5 + $0x728] sm:$0xff]
  %v1013 = vld [vmem:[%s5 + $0x730] sm:$0xff]
  %v1014 = vld [vmem:[%s5 + $0x738] sm:$0xff]
  %v1015 = vld [vmem:[%s5 + $0x740] sm:$0xff]
  %v1016 = vld [vmem:[%s5 + $0x748] sm:$0xff]
  %v1017 = vld [vmem:[%s5 + $0x750] sm:$0xff]
  %v1018 = vld [vmem:[%s5 + $0x758] sm:$0xff]
  %v1019 = vld [vmem:[%s5 + $0x760] sm:$0xff]
  %v1020 = vld [vmem:[%s5 + $0x768] sm:$0xff]
  %v1021 = vld [vmem:[%s5 + $0x770] sm:$0xff]
  %v1022 = vld [vmem:[%s5 + $0x778] sm:$0xff]
  %v1023 = vld [vmem:[%s5 + $0x780] sm:$0xff]
  %v1024 = vld [vmem:[%s5 + $0x788] sm:$0xff]
  %v1025 = vld [vmem:[%s5 + $0x790] sm:$0xff]
  %v1026 = vld [vmem:[%s5 + $0x798] sm:$0xff]
  %v1027 = vld [vmem:[%s5 + $0x7a0] sm:$0xff]
  %v1028 = vld [vmem:[%s5 + $0x7a8] sm:$0xff]
  %v1029 = vld [vmem:[%s5 + $0x7b0] sm:$0xff]
  %v1030 = vld [vmem:[%s5 + $0x7b8] sm:$0xff]
  %v1031 = vld [vmem:[%s5 + $0x7c0] sm:$0xff]
  %v1032 = vld [vmem:[%s5 + $0x7c8] sm:$0xff]
  %v1033 = vld [vmem:[%s5 + $0x7d0] sm:$0xff]
  %v1034 = vld [vmem:[%s5 + $0x7d8] sm:$0xff]
  %v1035 = vld [vmem:[%s5 + $0x7e0] sm:$0xff]
  %v1036 = vld [vmem:[%s5 + $0x7e8] sm:$0xff]
  %v1037 = vld [vmem:[%s5 + $0x7f0] sm:$0xff]
  %v1038 = vld [vmem:[%s5 + $0x7f8] sm:$0xff]
  %v1039 = vld [vmem:[%s5 + $0x800] sm:$0xff]
  %v1040 = vld [vmem:[%s5 + $0x808] sm:$0xff]
  %v1041 = vld [vmem:[%s5 + $0x810] sm:$0xff]
  %v1042 = vld [vmem:[%s5 + $0x818] sm:$0xff]
  %v1043 = vld [vmem:[%s5 + $0x820] sm:$0xff]
  %v1044 = vld [vmem:[%s5 + $0x828] sm:$0xff]
  %v1045 = vld [vmem:[%s5 + $0x830] sm:$0xff]
  %v1046 = vld [vmem:[%s5 + $0x838] sm:$0xff]
  %v1047 = vld [vmem:[%s5 + $0x840] sm:$0xff]
  %v1048 = vld [vmem:[%s5 + $0x848] sm:$0xff]
  %v1049 = vld [vmem:[%s5 + $0x850] sm:$0xff]
  %v1050 = vld [vmem:[%s5 + $0x858] sm:$0xff]
  %v1051 = vld [vmem:[%s5 + $0x860] sm:$0xff]
  %v1052 = vld [vmem:[%s5 + $0x868] sm:$0xff]
  %v1053 = vld [vmem:[%s5 + $0x870] sm:$0xff]
  %v1054 = vld [vmem:[%s5 + $0x878] sm:$0xff]
  %v1055 = vld [vmem:[%s5 + $0x880] sm:$0xff]
  %v1056 = vld [vmem:[%s5 + $0x888] sm:$0xff]
  %v1057 = vld [vmem:[%s5 + $0x890] sm:$0xff]
  %v1058 = vld [vmem:[%s5 + $0x898] sm:$0xff]
  %v1059 = vld [vmem:[%s5 + $0x8a0] sm:$0xff]
  %v1060 = vld [vmem:[%s5 + $0x8a8] sm:$0xff]
  %v1061 = vld [vmem:[%s5 + $0x8b0] sm:$0xff]
  %v1062 = vld [vmem:[%s5 + $0x8b8] sm:$0xff]
  %v1063 = vld [vmem:[%s5 + $0x8c0] sm:$0xff]
  %v1064 = vld [vmem:[%s5 + $0x8c8] sm:$0xff]
  %v1065 = vld [vmem:[%s5 + $0x8d0] sm:$0xff]
  %v1066 = vld [vmem:[%s5 + $0x8d8] sm:$0xff]
  %v1067 = vld [vmem:[%s5 + $0x8e0] sm:$0xff]
  %v1068 = vld [vmem:[%s5 + $0x8e8] sm:$0xff]
  %v1069 = vld [vmem:[%s5 + $0x8f0] sm:$0xff]
  %v1070 = vld [vmem:[%s5 + $0x8f8] sm:$0xff]
  %v1071 = vld [vmem:[%s5 + $0x900] sm:$0xff]
  %v1072 = vld [vmem:[%s5 + $0x908] sm:$0xff]
  %v1073 = vld [vmem:[%s5 + $0x910] sm:$0xff]
  %v1074 = vld [vmem:[%s5 + $0x918] sm:$0xff]
  %v1075 = vld [vmem:[%s5 + $0x920] sm:$0xff]
  %v1076 = vld [vmem:[%s5 + $0x928] sm:$0xff]
  %v1077 = vld [vmem:[%s5 + $0x930] sm:$0xff]
  %v1078 = vld [vmem:[%s5 + $0x938] sm:$0xff]
  %v1079 = vld [vmem:[%s5 + $0x940] sm:$0xff]
  %v1080 = vld [vmem:[%s5 + $0x948] sm:$0xff]
  %v1081 = vld [vmem:[%s5 + $0x950] sm:$0xff]
  %v1082 = vld [vmem:[%s5 + $0x958] sm:$0xff]
  %v1083 = vld [vmem:[%s5 + $0x960] sm:$0xff]
  %v1084 = vld [vmem:[%s5 + $0x968] sm:$0xff]
  %v1085 = vld [vmem:[%s5 + $0x970] sm:$0xff]
  %v1086 = vld [vmem:[%s5 + $0x978] sm:$0xff]
  %v1087 = vld [vmem:[%s5 + $0x980] sm:$0xff]
  %v1088 = vld [vmem:[%s5 + $0x988] sm:$0xff]
  %v1089 = vld [vmem:[%s5 + $0x990] sm:$0xff]
  %v1090 = vld [vmem:[%s5 + $0x998] sm:$0xff]
  %v1091 = vld [vmem:[%s5 + $0x9a0] sm:$0xff]
  %v1092 = vld [vmem:[%s5 + $0x9a8] sm:$0xff]
  %v1093 = vld [vmem:[%s5 + $0x9b0] sm:$0xff]
  %v1094 = vld [vmem:[%s5 + $0x9b8] sm:$0xff]
  %v1095 = vld [vmem:[%s5 + $0x9c0] sm:$0xff]
  %v1096 = vld [vmem:[%s5 + $0x9c8] sm:$0xff]
  %v1097 = vld [vmem:[%s5 + $0x9d0] sm:$0xff]
  %v1098 = vld [vmem:[%s5 + $0x9d8] sm:$0xff]
  %v1099 = vld [vmem:[%s5 + $0x9e0] sm:$0xff]
  %v1100 = vld [vmem:[%s5 + $0x9e8] sm:$0xff]
  %v1101 = vld [vmem:[%s5 + $0x9f0] sm:$0xff]
  %v1102 = vld [vmem:[%s5 + $0x9f8] sm:$0xff]
  %v1103 = vld [vmem:[%s5 + $0xa00] sm:$0xff]
  %v1104 = vld [vmem:[%s5 + $0xa08] sm:$0xff]
  %v1105 = vld [vmem:[%s5 + $0xa10] sm:$0xff]
  %v1106 = vld [vmem:[%s5 + $0xa18] sm:$0xff]
  %v1107 = vld [vmem:[%s5 + $0xa20] sm:$0xff]
  %v1108 = vld [vmem:[%s5 + $0xa28] sm:$0xff]
  %v1109 = vld [vmem:[%s5 + $0xa30] sm:$0xff]
  %v1110 = vld [vmem:[%s5 + $0xa38] sm:$0xff]
  %v1111 = vld [vmem:[%s5 + $0xa40] sm:$0xff]
  %v1112 = vld [vmem:[%s5 + $0xa48] sm:$0xff]
  %v1113 = vld [vmem:[%s5 + $0xa50] sm:$0xff]
  %v1114 = vld [vmem:[%s5 + $0xa58] sm:$0xff]
  %v1115 = vld [vmem:[%s5 + $0xa60] sm:$0xff]
  %v1116 = vld [vmem:[%s5 + $0xa68] sm:$0xff]
  %v1117 = vld [vmem:[%s5 + $0xa70] sm:$0xff]
  %v1118 = vld [vmem:[%s5 + $0xa78] sm:$0xff]
  %v1119 = vld [vmem:[%s5 + $0xa80] sm:$0xff]
  %v1120 = vld [vmem:[%s5 + $0xa88] sm:$0xff]
  %v1121 = vld [vmem:[%s5 + $0xa90] sm:$0xff]
  %v1122 = vld [vmem:[%s5 + $0xa98] sm:$0xff]
  %v1123 = vld [vmem:[%s5 + $0xaa0] sm:$0xff]
  %v1124 = vld [vmem:[%s5 + $0xaa8] sm:$0xff]
  %v1125 = vld [vmem:[%s5 + $0xab0] sm:$0xff]
  %v1126 = vld [vmem:[%s5 + $0xab8] sm:$0xff]
  %v1127 = vld [vmem:[%s5 + $0xac0] sm:$0xff]
  %v1128 = vld [vmem:[%s5 + $0xac8] sm:$0xff]
  %v1129 = vld [vmem:[%s5 + $0xad0] sm:$0xff]
  %v1130 = vld [vmem:[%s5 + $0xad8] sm:$0xff]
  %v1131 = vld [vmem:[%s5 + $0xae0] sm:$0xff]
  %v1132 = vld [vmem:[%s5 + $0xae8] sm:$0xff]
  %v1133 = vld [vmem:[%s5 + $0xaf0] sm:$0xff]
  %v1134 = vld [vmem:[%s5 + $0xaf8] sm:$0xff]
  %v1135 = vld [vmem:[%s5 + $0xb00] sm:$0xff]
  %v1136 = vld [vmem:[%s5 + $0xb08] sm:$0xff]
  %v1137 = vld [vmem:[%s5 + $0xb10] sm:$0xff]
  %v1138 = vld [vmem:[%s5 + $0xb18] sm:$0xff]
  %v1139 = vld [vmem:[%s5 + $0xb20] sm:$0xff]
  %v1140 = vld [vmem:[%s5 + $0xb28] sm:$0xff]
  %v1141 = vld [vmem:[%s5 + $0xb30] sm:$0xff]
  %v1142 = vld [vmem:[%s5 + $0xb38] sm:$0xff]
  %v1143 = vld [vmem:[%s5 + $0xb40] sm:$0xff]
  %v1144 = vld [vmem:[%s5 + $0xb48] sm:$0xff]
  %v1145 = vld [vmem:[%s5 + $0xb50] sm:$0xff]
  %v1146 = vld [vmem:[%s5 + $0xb58] sm:$0xff]
  %v1147 = vld [vmem:[%s5 + $0xb60] sm:$0xff]
  %v1148 = vld [vmem:[%s5 + $0xb68] sm:$0xff]
  %v1149 = vld [vmem:[%s5 + $0xb70] sm:$0xff]
  %v1150 = vld [vmem:[%s5 + $0xb78] sm:$0xff]
  %v1151 = vld [vmem:[%s5 + $0xb80] sm:$0xff]
  %v1152 = vld [vmem:[%s5 + $0xb88] sm:$0xff]
  %v1153 = vld [vmem:[%s5 + $0xb90] sm:$0xff]
  %v1154 = vld [vmem:[%s5 + $0xb98] sm:$0xff]
  %v1155 = vld [vmem:[%s5 + $0xba0] sm:$0xff]
  %v1156 = vld [vmem:[%s5 + $0xba8] sm:$0xff]
  %v1157 = vld [vmem:[%s5 + $0xbb0] sm:$0xff]
  %v1158 = vld [vmem:[%s5 + $0xbb8] sm:$0xff]
  %v1159 = vld [vmem:[%s5 + $0xbc0] sm:$0xff]
  %v1160 = vld [vmem:[%s5 + $0xbc8] sm:$0xff]
  %v1161 = vld [vmem:[%s5 + $0xbd0] sm:$0xff]
  %v1162 = vld [vmem:[%s5 + $0xbd8] sm:$0xff]
  %v1163 = vld [vmem:[%s5 + $0xbe0] sm:$0xff]
  %v1164 = vld [vmem:[%s5 + $0xbe8] sm:$0xff]
  %v1165 = vld [vmem:[%s5 + $0xbf0] sm:$0xff]
  %v1166 = vld [vmem:[%s5 + $0xbf8] sm:$0xff]
  %v1167 = vld [vmem:[%s5 + $0xc00] sm:$0xff]
  %v1168 = vld [vmem:[%s5 + $0xc08] sm:$0xff]
  %v1169 = vld [vmem:[%s5 + $0xc10] sm:$0xff]
  %v1170 = vld [vmem:[%s5 + $0xc18] sm:$0xff]
  %v1171 = vld [vmem:[%s5 + $0xc20] sm:$0xff]
  %v1172 = vld [vmem:[%s5 + $0xc28] sm:$0xff]
  %v1173 = vld [vmem:[%s5 + $0xc30] sm:$0xff]
  %v1174 = vld [vmem:[%s5 + $0xc38] sm:$0xff]
  %v1175 = vld [vmem:[%s5 + $0xc40] sm:$0xff]
  %v1176 = vld [vmem:[%s5 + $0xc48] sm:$0xff]
  %v1177 = vld [vmem:[%s5 + $0xc50] sm:$0xff]
  %v1178 = vld [vmem:[%s5 + $0xc58] sm:$0xff]
  %v1179 = vld [vmem:[%s5 + $0xc60] sm:$0xff]
  %v1180 = vld [vmem:[%s5 + $0xc68] sm:$0xff]
  %v1181 = vld [vmem:[%s5 + $0xc70] sm:$0xff]
  %v1182 = vld [vmem:[%s5 + $0xc78] sm:$0xff]
  %v1183 = vld [vmem:[%s5 + $0xc80] sm:$0xff]
  %v1184 = vld [vmem:[%s5 + $0xc88] sm:$0xff]
  %v1185 = vld [vmem:[%s5 + $0xc90] sm:$0xff]
  %v1186 = vld [vmem:[%s5 + $0xc98] sm:$0xff]
  %v1187 = vld [vmem:[%s5 + $0xca0] sm:$0xff]
  %v1188 = vld [vmem:[%s5 + $0xca8] sm:$0xff]
  %v1189 = vld [vmem:[%s5 + $0xcb0] sm:$0xff]
  %v1190 = vld [vmem:[%s5 + $0xcb8] sm:$0xff]
  %v1191 = vld [vmem:[%s5 + $0xcc0] sm:$0xff]
  %v1192 = vld [vmem:[%s5 + $0xcc8] sm:$0xff]
  %v1193 = vld [vmem:[%s5 + $0xcd0] sm:$0xff]
  %v1194 = vld [vmem:[%s5 + $0xcd8] sm:$0xff]
  %v1195 = vld [vmem:[%s5 + $0xce0] sm:$0xff]
  %v1196 = vld [vmem:[%s5 + $0xce8] sm:$0xff]
  %v1197 = vld [vmem:[%s5 + $0xcf0] sm:$0xff]
  %v1198 = vld [vmem:[%s5 + $0xcf8] sm:$0xff]
  %v1199 = vld [vmem:[%s5 + $0xd00] sm:$0xff]
  %v1200 = vld [vmem:[%s5 + $0xd08] sm:$0xff]
  %v1201 = vld [vmem:[%s5 + $0xd10] sm:$0xff]
  %v1202 = vld [vmem:[%s5 + $0xd18] sm:$0xff]
  %v1203 = vld [vmem:[%s5 + $0xd20] sm:$0xff]
  %v1204 = vld [vmem:[%s5 + $0xd28] sm:$0xff]
  %v1205 = vld [vmem:[%s5 + $0xd30] sm:$0xff]
  %v1206 = vld [vmem:[%s5 + $0xd38] sm:$0xff]
  %v1207 = vld [vmem:[%s5 + $0xd40] sm:$0xff]
  %v1208 = vld [vmem:[%s5 + $0xd48] sm:$0xff]
  %v1209 = vld [vmem:[%s5 + $0xd50] sm:$0xff]
  %v1210 = vld [vmem:[%s5 + $0xd58] sm:$0xff]
  %v1211 = vld [vmem:[%s5 + $0xd60] sm:$0xff]
  %v1212 = vld [vmem:[%s5 + $0xd68] sm:$0xff]
  %v1213 = vld [vmem:[%s5 + $0xd70] sm:$0xff]
  %v1214 = vld [vmem:[%s5 + $0xd78] sm:$0xff]
  %v1215 = vld [vmem:[%s5 + $0xd80] sm:$0xff]
  %v1216 = vld [vmem:[%s5 + $0xd88] sm:$0xff]
  %v1217 = vld [vmem:[%s5 + $0xd90] sm:$0xff]
  %v1218 = vld [vmem:[%s5 + $0xd98] sm:$0xff]
  %v1219 = vld [vmem:[%s5 + $0xda0] sm:$0xff]
  %v1220 = vld [vmem:[%s5 + $0xda8] sm:$0xff]
  %v1221 = vld [vmem:[%s5 + $0xdb0] sm:$0xff]
  %v1222 = vld [vmem:[%s5 + $0xdb8] sm:$0xff]
  %v1223 = vld [vmem:[%s5 + $0xdc0] sm:$0xff]
  %v1224 = vld [vmem:[%s5 + $0xdc8] sm:$0xff]
  %v1225 = vld [vmem:[%s5 + $0xdd0] sm:$0xff]
  %v1226 = vld [vmem:[%s5 + $0xdd8] sm:$0xff]
  %v1227 = vld [vmem:[%s5 + $0xde0] sm:$0xff]
  %v1228 = vld [vmem:[%s5 + $0xde8] sm:$0xff]
  %v1229 = vld [vmem:[%s5 + $0xdf0] sm:$0xff]
  %v1230 = vld [vmem:[%s5 + $0xdf8] sm:$0xff]
  %v1231 = vld [vmem:[%s6] sm:$0xf]
  %v1233 = vperm.slane %v1231, 0
  %v1234 = vperm.slane %v1231, 1
  %v1235 = vperm.slane %v1231, 2
  %v1236 = vperm.slane %v1231, 3
  %1241 = vmatpush.msra.mxu0 %v843
  %1242 = vmatpush.msra.mxu0 %v839
  %1243 = vmatpush.msra.mxu0 %v835
  %1244 = vmatpush.msra.mxu0 %v831
  %1245 = vmatpush.msra.mxu0 %v827
  %1246 = vmatpush.msra.mxu0 %v823
  %1247 = vmatpush.msra.mxu0 %v819
  %1248 = vmatpush.msra.mxu0 %v815
  %1249 = vmatpush.msra.mxu0 %v811
  %1250 = vmatpush.msra.mxu0 %v807
  %1251 = vmatpush.msra.mxu0 %v803
  %1252 = vmatpush.msra.mxu0 %v799
  %1253 = vmatpush.msra.mxu0 %v795
  %1254 = vmatpush.msra.mxu0 %v791
  %1255 = vmatpush.msra.mxu0 %v787
  %1256 = vmatpush.msra.mxu0 %v783
  %1257 = vmatmul.f32.gmra.mxu0 %v776
  %v1258 = vpop.f32.mrf.mxu0
  %v1259 = vadd.f32 %v1233, %v1258
  %1260 = vdwg.mxu0
  %1261 = vmatpush.msra.mxu0 %v907
  %1262 = vmatpush.msra.mxu0 %v903
  %1263 = vmatpush.msra.mxu0 %v899
  %1264 = vmatpush.msra.mxu0 %v895
  %1265 = vmatpush.msra.mxu0 %v891
  %1266 = vmatpush.msra.mxu0 %v887
  %1267 = vmatpush.msra.mxu0 %v883
  %1268 = vmatpush.msra.mxu0 %v879
  %1269 = vmatpush.msra.mxu0 %v875
  %1270 = vmatpush.msra.mxu0 %v871
  %1271 = vmatpush.msra.mxu0 %v867
  %1272 = vmatpush.msra.mxu0 %v863
  %1273 = vmatpush.msra.mxu0 %v859
  %1274 = vmatpush.msra.mxu0 %v855
  %1275 = vmatpush.msra.mxu0 %v851
  %1276 = vmatpush.msra.mxu0 %v847
  %1277 = vmatmul.f32.gmra.mxu0 %v777
  %v1278 = vpop.f32.mrf.mxu0
  %v1279 = vadd.f32 %v1259, %v1278
  %1280 = vdwg.mxu0
  %1281 = vmatpush.msra.mxu0 %v971
  %1282 = vmatpush.msra.mxu0 %v967
  %1283 = vmatpush.msra.mxu0 %v963
  %1284 = vmatpush.msra.mxu0 %v959
  %1285 = vmatpush.msra.mxu0 %v955
  %1286 = vmatpush.msra.mxu0 %v951
  %1287 = vmatpush.msra.mxu0 %v947
  %1288 = vmatpush.msra.mxu0 %v943
  %1289 = vmatpush.msra.mxu0 %v939
  %1290 = vmatpush.msra.mxu0 %v935
  %1291 = vmatpush.msra.mxu0 %v931
  %1292 = vmatpush.msra.mxu0 %v927
  %1293 = vmatpush.msra.mxu0 %v923
  %1294 = vmatpush.msra.mxu0 %v919
  %1295 = vmatpush.msra.mxu0 %v915
  %1296 = vmatpush.msra.mxu0 %v911
  %1297 = vmatmul.f32.gmra.mxu0 %v778
  %v1298 = vpop.f32.mrf.mxu0
  %v1299 = vadd.f32 %v1279, %v1298
  %1300 = vdwg.mxu0
  %1301 = vmatpush.msra.mxu0 %v1035
  %1302 = vmatpush.msra.mxu0 %v1031
  %1303 = vmatpush.msra.mxu0 %v1027
  %1304 = vmatpush.msra.mxu0 %v1023
  %1305 = vmatpush.msra.mxu0 %v1019
  %1306 = vmatpush.msra.mxu0 %v1015
  %1307 = vmatpush.msra.mxu0 %v1011
  %1308 = vmatpush.msra.mxu0 %v1007
  %1309 = vmatpush.msra.mxu0 %v1003
  %1310 = vmatpush.msra.mxu0 %v999
  %1311 = vmatpush.msra.mxu0 %v995
  %1312 = vmatpush.msra.mxu0 %v991
  %1313 = vmatpush.msra.mxu0 %v987
  %1314 = vmatpush.msra.mxu0 %v983
  %1315 = vmatpush.msra.mxu0 %v979
  %1316 = vmatpush.msra.mxu0 %v975
  %1317 = vmatmul.f32.gmra.mxu0 %v779
  %v1318 = vpop.f32.mrf.mxu0
  %v1319 = vadd.f32 %v1299, %v1318
  %1320 = vdwg.mxu0
  %1321 = vmatpush.msra.mxu0 %v1099
  %1322 = vmatpush.msra.mxu0 %v1095
  %1323 = vmatpush.msra.mxu0 %v1091
  %1324 = vmatpush.msra.mxu0 %v1087
  %1325 = vmatpush.msra.mxu0 %v1083
  %1326 = vmatpush.msra.mxu0 %v1079
  %1327 = vmatpush.msra.mxu0 %v1075
  %1328 = vmatpush.msra.mxu0 %v1071
  %1329 = vmatpush.msra.mxu0 %v1067
  %1330 = vmatpush.msra.mxu0 %v1063
  %1331 = vmatpush.msra.mxu0 %v1059
  %1332 = vmatpush.msra.mxu0 %v1055
  %1333 = vmatpush.msra.mxu0 %v1051
  %1334 = vmatpush.msra.mxu0 %v1047
  %1335 = vmatpush.msra.mxu0 %v1043
  %1336 = vmatpush.msra.mxu0 %v1039
  %1337 = vmatmul.f32.gmra.mxu0 %v780
  %v1338 = vpop.f32.mrf.mxu0
  %v1339 = vadd.f32 %v1319, %v1338
  %1340 = vdwg.mxu0
  %1341 = vmatpush.msra.mxu0 %v1163
  %1342 = vmatpush.msra.mxu0 %v1159
  %1343 = vmatpush.msra.mxu0 %v1155
  %1344 = vmatpush.msra.mxu0 %v1151
  %1345 = vmatpush.msra.mxu0 %v1147
  %1346 = vmatpush.msra.mxu0 %v1143
  %1347 = vmatpush.msra.mxu0 %v1139
  %1348 = vmatpush.msra.mxu0 %v1135
  %1349 = vmatpush.msra.mxu0 %v1131
  %1350 = vmatpush.msra.mxu0 %v1127
  %1351 = vmatpush.msra.mxu0 %v1123
  %1352 = vmatpush.msra.mxu0 %v1119
  %1353 = vmatpush.msra.mxu0 %v1115
  %1354 = vmatpush.msra.mxu0 %v1111
  %1355 = vmatpush.msra.mxu0 %v1107
  %1356 = vmatpush.msra.mxu0 %v1103
  %1357 = vmatmul.f32.gmra.mxu0 %v781
  %v1358 = vpop.f32.mrf.mxu0
  %v1359 = vadd.f32 %v1339, %v1358
  %1360 = vdwg.mxu0
  %1361 = vmatpush.msra.mxu0 %v1227
  %1362 = vmatpush.msra.mxu0 %v1223
  %1363 = vmatpush.msra.mxu0 %v1219
  %1364 = vmatpush.msra.mxu0 %v1215
  %1365 = vmatpush.msra.mxu0 %v1211
  %1366 = vmatpush.msra.mxu0 %v1207
  %1367 = vmatpush.msra.mxu0 %v1203
  %1368 = vmatpush.msra.mxu0 %v1199
  %1369 = vmatpush.msra.mxu0 %v1195
  %1370 = vmatpush.msra.mxu0 %v1191
  %1371 = vmatpush.msra.mxu0 %v1187
  %1372 = vmatpush.msra.mxu0 %v1183
  %1373 = vmatpush.msra.mxu0 %v1179
  %1374 = vmatpush.msra.mxu0 %v1175
  %1375 = vmatpush.msra.mxu0 %v1171
  %1376 = vmatpush.msra.mxu0 %v1167
  %1377 = vmatmul.f32.gmra.mxu0 %v782
  %v1378 = vpop.f32.mrf.mxu0
  %v1379 = vadd.f32 %v1359, %v1378
  %1380 = vdwg.mxu0
  %1381 = vmatpush.msra.mxu0 %v844
  %1382 = vmatpush.msra.mxu0 %v840
  %1383 = vmatpush.msra.mxu0 %v836
  %1384 = vmatpush.msra.mxu0 %v832
  %1385 = vmatpush.msra.mxu0 %v828
  %1386 = vmatpush.msra.mxu0 %v824
  %1387 = vmatpush.msra.mxu0 %v820
  %1388 = vmatpush.msra.mxu0 %v816
  %1389 = vmatpush.msra.mxu0 %v812
  %1390 = vmatpush.msra.mxu0 %v808
  %1391 = vmatpush.msra.mxu0 %v804
  %1392 = vmatpush.msra.mxu0 %v800
  %1393 = vmatpush.msra.mxu0 %v796
  %1394 = vmatpush.msra.mxu0 %v792
  %1395 = vmatpush.msra.mxu0 %v788
  %1396 = vmatpush.msra.mxu0 %v784
  %1397 = vmatmul.f32.gmra.mxu0 %v776
  %v1398 = vpop.f32.mrf.mxu0
  %v1399 = vadd.f32 %v1234, %v1398
  %1400 = vdwg.mxu0
  %1401 = vmatpush.msra.mxu0 %v908
  %1402 = vmatpush.msra.mxu0 %v904
  %1403 = vmatpush.msra.mxu0 %v900
  %1404 = vmatpush.msra.mxu0 %v896
  %1405 = vmatpush.msra.mxu0 %v892
  %1406 = vmatpush.msra.mxu0 %v888
  %1407 = vmatpush.msra.mxu0 %v884
  %1408 = vmatpush.msra.mxu0 %v880
  %1409 = vmatpush.msra.mxu0 %v876
  %1410 = vmatpush.msra.mxu0 %v872
  %1411 = vmatpush.msra.mxu0 %v868
  %1412 = vmatpush.msra.mxu0 %v864
  %1413 = vmatpush.msra.mxu0 %v860
  %1414 = vmatpush.msra.mxu0 %v856
  %1415 = vmatpush.msra.mxu0 %v852
  %1416 = vmatpush.msra.mxu0 %v848
  %1417 = vmatmul.f32.gmra.mxu0 %v777
  %v1418 = vpop.f32.mrf.mxu0
  %v1419 = vadd.f32 %v1399, %v1418
  %1420 = vdwg.mxu0
  %1421 = vmatpush.msra.mxu0 %v972
  %1422 = vmatpush.msra.mxu0 %v968
  %1423 = vmatpush.msra.mxu0 %v964
  %1424 = vmatpush.msra.mxu0 %v960
  %1425 = vmatpush.msra.mxu0 %v956
  %1426 = vmatpush.msra.mxu0 %v952
  %1427 = vmatpush.msra.mxu0 %v948
  %1428 = vmatpush.msra.mxu0 %v944
  %1429 = vmatpush.msra.mxu0 %v940
  %1430 = vmatpush.msra.mxu0 %v936
  %1431 = vmatpush.msra.mxu0 %v932
  %1432 = vmatpush.msra.mxu0 %v928
  %1433 = vmatpush.msra.mxu0 %v924
  %1434 = vmatpush.msra.mxu0 %v920
  %1435 = vmatpush.msra.mxu0 %v916
  %1436 = vmatpush.msra.mxu0 %v912
  %1437 = vmatmul.f32.gmra.mxu0 %v778
  %v1438 = vpop.f32.mrf.mxu0
  %v1439 = vadd.f32 %v1419, %v1438
  %1440 = vdwg.mxu0
  %1441 = vmatpush.msra.mxu0 %v1036
  %1442 = vmatpush.msra.mxu0 %v1032
  %1443 = vmatpush.msra.mxu0 %v1028
  %1444 = vmatpush.msra.mxu0 %v1024
  %1445 = vmatpush.msra.mxu0 %v1020
  %1446 = vmatpush.msra.mxu0 %v1016
  %1447 = vmatpush.msra.mxu0 %v1012
  %1448 = vmatpush.msra.mxu0 %v1008
  %1449 = vmatpush.msra.mxu0 %v1004
  %1450 = vmatpush.msra.mxu0 %v1000
  %1451 = vmatpush.msra.mxu0 %v996
  %1452 = vmatpush.msra.mxu0 %v992
  %1453 = vmatpush.msra.mxu0 %v988
  %1454 = vmatpush.msra.mxu0 %v984
  %1455 = vmatpush.msra.mxu0 %v980
  %1456 = vmatpush.msra.mxu0 %v976
  %1457 = vmatmul.f32.gmra.mxu0 %v779
  %v1458 = vpop.f32.mrf.mxu0
  %v1459 = vadd.f32 %v1439, %v1458
  %1460 = vdwg.mxu0
  %1461 = vmatpush.msra.mxu0 %v1100
  %1462 = vmatpush.msra.mxu0 %v1096
  %1463 = vmatpush.msra.mxu0 %v1092
  %1464 = vmatpush.msra.mxu0 %v1088
  %1465 = vmatpush.msra.mxu0 %v1084
  %1466 = vmatpush.msra.mxu0 %v1080
  %1467 = vmatpush.msra.mxu0 %v1076
  %1468 = vmatpush.msra.mxu0 %v1072
  %1469 = vmatpush.msra.mxu0 %v1068
  %1470 = vmatpush.msra.mxu0 %v1064
  %1471 = vmatpush.msra.mxu0 %v1060
  %1472 = vmatpush.msra.mxu0 %v1056
  %1473 = vmatpush.msra.mxu0 %v1052
  %1474 = vmatpush.msra.mxu0 %v1048
  %1475 = vmatpush.msra.mxu0 %v1044
  %1476 = vmatpush.msra.mxu0 %v1040
  %1477 = vmatmul.f32.gmra.mxu0 %v780
  %v1478 = vpop.f32.mrf.mxu0
  %v1479 = vadd.f32 %v1459, %v1478
  %1480 = vdwg.mxu0
  %1481 = vmatpush.msra.mxu0 %v1164
  %1482 = vmatpush.msra.mxu0 %v1160
  %1483 = vmatpush.msra.mxu0 %v1156
  %1484 = vmatpush.msra.mxu0 %v1152
  %1485 = vmatpush.msra.mxu0 %v1148
  %1486 = vmatpush.msra.mxu0 %v1144
  %1487 = vmatpush.msra.mxu0 %v1140
  %1488 = vmatpush.msra.mxu0 %v1136
  %1489 = vmatpush.msra.mxu0 %v1132
  %1490 = vmatpush.msra.mxu0 %v1128
  %1491 = vmatpush.msra.mxu0 %v1124
  %1492 = vmatpush.msra.mxu0 %v1120
  %1493 = vmatpush.msra.mxu0 %v1116
  %1494 = vmatpush.msra.mxu0 %v1112
  %1495 = vmatpush.msra.mxu0 %v1108
  %1496 = vmatpush.msra.mxu0 %v1104
  %1497 = vmatmul.f32.gmra.mxu0 %v781
  %v1498 = vpop.f32.mrf.mxu0
  %v1499 = vadd.f32 %v1479, %v1498
  %1500 = vdwg.mxu0
  %1501 = vmatpush.msra.mxu0 %v1228
  %1502 = vmatpush.msra.mxu0 %v1224
  %1503 = vmatpush.msra.mxu0 %v1220
  %1504 = vmatpush.msra.mxu0 %v1216
  %1505 = vmatpush.msra.mxu0 %v1212
  %1506 = vmatpush.msra.mxu0 %v1208
  %1507 = vmatpush.msra.mxu0 %v1204
  %1508 = vmatpush.msra.mxu0 %v1200
  %1509 = vmatpush.msra.mxu0 %v1196
  %1510 = vmatpush.msra.mxu0 %v1192
  %1511 = vmatpush.msra.mxu0 %v1188
  %1512 = vmatpush.msra.mxu0 %v1184
  %1513 = vmatpush.msra.mxu0 %v1180
  %1514 = vmatpush.msra.mxu0 %v1176
  %1515 = vmatpush.msra.mxu0 %v1172
  %1516 = vmatpush.msra.mxu0 %v1168
  %1517 = vmatmul.f32.gmra.mxu0 %v782
  %v1518 = vpop.f32.mrf.mxu0
  %v1519 = vadd.f32 %v1499, %v1518
  %1520 = vdwg.mxu0
  %1521 = vmatpush.msra.mxu0 %v845
  %1522 = vmatpush.msra.mxu0 %v841
  %1523 = vmatpush.msra.mxu0 %v837
  %1524 = vmatpush.msra.mxu0 %v833
  %1525 = vmatpush.msra.mxu0 %v829
  %1526 = vmatpush.msra.mxu0 %v825
  %1527 = vmatpush.msra.mxu0 %v821
  %1528 = vmatpush.msra.mxu0 %v817
  %1529 = vmatpush.msra.mxu0 %v813
  %1530 = vmatpush.msra.mxu0 %v809
  %1531 = vmatpush.msra.mxu0 %v805
  %1532 = vmatpush.msra.mxu0 %v801
  %1533 = vmatpush.msra.mxu0 %v797
  %1534 = vmatpush.msra.mxu0 %v793
  %1535 = vmatpush.msra.mxu0 %v789
  %1536 = vmatpush.msra.mxu0 %v785
  %1537 = vmatmul.f32.gmra.mxu0 %v776
  %v1538 = vpop.f32.mrf.mxu0
  %v1539 = vadd.f32 %v1235, %v1538
  %1540 = vdwg.mxu0
  %1541 = vmatpush.msra.mxu0 %v909
  %1542 = vmatpush.msra.mxu0 %v905
  %1543 = vmatpush.msra.mxu0 %v901
  %1544 = vmatpush.msra.mxu0 %v897
  %1545 = vmatpush.msra.mxu0 %v893
  %1546 = vmatpush.msra.mxu0 %v889
  %1547 = vmatpush.msra.mxu0 %v885
  %1548 = vmatpush.msra.mxu0 %v881
  %1549 = vmatpush.msra.mxu0 %v877
  %1550 = vmatpush.msra.mxu0 %v873
  %1551 = vmatpush.msra.mxu0 %v869
  %1552 = vmatpush.msra.mxu0 %v865
  %1553 = vmatpush.msra.mxu0 %v861
  %1554 = vmatpush.msra.mxu0 %v857
  %1555 = vmatpush.msra.mxu0 %v853
  %1556 = vmatpush.msra.mxu0 %v849
  %1557 = vmatmul.f32.gmra.mxu0 %v777
  %v1558 = vpop.f32.mrf.mxu0
  %v1559 = vadd.f32 %v1539, %v1558
  %1560 = vdwg.mxu0
  %1561 = vmatpush.msra.mxu0 %v973
  %1562 = vmatpush.msra.mxu0 %v969
  %1563 = vmatpush.msra.mxu0 %v965
  %1564 = vmatpush.msra.mxu0 %v961
  %1565 = vmatpush.msra.mxu0 %v957
  %1566 = vmatpush.msra.mxu0 %v953
  %1567 = vmatpush.msra.mxu0 %v949
  %1568 = vmatpush.msra.mxu0 %v945
  %1569 = vmatpush.msra.mxu0 %v941
  %1570 = vmatpush.msra.mxu0 %v937
  %1571 = vmatpush.msra.mxu0 %v933
  %1572 = vmatpush.msra.mxu0 %v929
  %1573 = vmatpush.msra.mxu0 %v925
  %1574 = vmatpush.msra.mxu0 %v921
  %1575 = vmatpush.msra.mxu0 %v917
  %1576 = vmatpush.msra.mxu0 %v913
  %1577 = vmatmul.f32.gmra.mxu0 %v778
  %v1578 = vpop.f32.mrf.mxu0
  %v1579 = vadd.f32 %v1559, %v1578
  %1580 = vdwg.mxu0
  %1581 = vmatpush.msra.mxu0 %v1037
  %1582 = vmatpush.msra.mxu0 %v1033
  %1583 = vmatpush.msra.mxu0 %v1029
  %1584 = vmatpush.msra.mxu0 %v1025
  %1585 = vmatpush.msra.mxu0 %v1021
  %1586 = vmatpush.msra.mxu0 %v1017
  %1587 = vmatpush.msra.mxu0 %v1013
  %1588 = vmatpush.msra.mxu0 %v1009
  %1589 = vmatpush.msra.mxu0 %v1005
  %1590 = vmatpush.msra.mxu0 %v1001
  %1591 = vmatpush.msra.mxu0 %v997
  %1592 = vmatpush.msra.mxu0 %v993
  %1593 = vmatpush.msra.mxu0 %v989
  %1594 = vmatpush.msra.mxu0 %v985
  %1595 = vmatpush.msra.mxu0 %v981
  %1596 = vmatpush.msra.mxu0 %v977
  %1597 = vmatmul.f32.gmra.mxu0 %v779
  %v1598 = vpop.f32.mrf.mxu0
  %v1599 = vadd.f32 %v1579, %v1598
  %1600 = vdwg.mxu0
  %1601 = vmatpush.msra.mxu0 %v1101
  %1602 = vmatpush.msra.mxu0 %v1097
  %1603 = vmatpush.msra.mxu0 %v1093
  %1604 = vmatpush.msra.mxu0 %v1089
  %1605 = vmatpush.msra.mxu0 %v1085
  %1606 = vmatpush.msra.mxu0 %v1081
  %1607 = vmatpush.msra.mxu0 %v1077
  %1608 = vmatpush.msra.mxu0 %v1073
  %1609 = vmatpush.msra.mxu0 %v1069
  %1610 = vmatpush.msra.mxu0 %v1065
  %1611 = vmatpush.msra.mxu0 %v1061
  %1612 = vmatpush.msra.mxu0 %v1057
  %1613 = vmatpush.msra.mxu0 %v1053
  %1614 = vmatpush.msra.mxu0 %v1049
  %1615 = vmatpush.msra.mxu0 %v1045
  %1616 = vmatpush.msra.mxu0 %v1041
  %1617 = vmatmul.f32.gmra.mxu0 %v780
  %v1618 = vpop.f32.mrf.mxu0
  %v1619 = vadd.f32 %v1599, %v1618
  %1620 = vdwg.mxu0
  %1621 = vmatpush.msra.mxu0 %v1165
  %1622 = vmatpush.msra.mxu0 %v1161
  %1623 = vmatpush.msra.mxu0 %v1157
  %1624 = vmatpush.msra.mxu0 %v1153
  %1625 = vmatpush.msra.mxu0 %v1149
  %1626 = vmatpush.msra.mxu0 %v1145
  %1627 = vmatpush.msra.mxu0 %v1141
  %1628 = vmatpush.msra.mxu0 %v1137
  %1629 = vmatpush.msra.mxu0 %v1133
  %1630 = vmatpush.msra.mxu0 %v1129
  %1631 = vmatpush.msra.mxu0 %v1125
  %1632 = vmatpush.msra.mxu0 %v1121
  %1633 = vmatpush.msra.mxu0 %v1117
  %1634 = vmatpush.msra.mxu0 %v1113
  %1635 = vmatpush.msra.mxu0 %v1109
  %1636 = vmatpush.msra.mxu0 %v1105
  %1637 = vmatmul.f32.gmra.mxu0 %v781
  %v1638 = vpop.f32.mrf.mxu0
  %v1639 = vadd.f32 %v1619, %v1638
  %1640 = vdwg.mxu0
  %1641 = vmatpush.msra.mxu0 %v1229
  %1642 = vmatpush.msra.mxu0 %v1225
  %1643 = vmatpush.msra.mxu0 %v1221
  %1644 = vmatpush.msra.mxu0 %v1217
  %1645 = vmatpush.msra.mxu0 %v1213
  %1646 = vmatpush.msra.mxu0 %v1209
  %1647 = vmatpush.msra.mxu0 %v1205
  %1648 = vmatpush.msra.mxu0 %v1201
  %1649 = vmatpush.msra.mxu0 %v1197
  %1650 = vmatpush.msra.mxu0 %v1193
  %1651 = vmatpush.msra.mxu0 %v1189
  %1652 = vmatpush.msra.mxu0 %v1185
  %1653 = vmatpush.msra.mxu0 %v1181
  %1654 = vmatpush.msra.mxu0 %v1177
  %1655 = vmatpush.msra.mxu0 %v1173
  %1656 = vmatpush.msra.mxu0 %v1169
  %1657 = vmatmul.f32.gmra.mxu0 %v782
  %v1658 = vpop.f32.mrf.mxu0
  %v1659 = vadd.f32 %v1639, %v1658
  %1660 = vdwg.mxu0
  %1661 = vmatpush.msra.mxu0 %v846
  %1662 = vmatpush.msra.mxu0 %v842
  %1663 = vmatpush.msra.mxu0 %v838
  %1664 = vmatpush.msra.mxu0 %v834
  %1665 = vmatpush.msra.mxu0 %v830
  %1666 = vmatpush.msra.mxu0 %v826
  %1667 = vmatpush.msra.mxu0 %v822
  %1668 = vmatpush.msra.mxu0 %v818
  %1669 = vmatpush.msra.mxu0 %v814
  %1670 = vmatpush.msra.mxu0 %v810
  %1671 = vmatpush.msra.mxu0 %v806
  %1672 = vmatpush.msra.mxu0 %v802
  %1673 = vmatpush.msra.mxu0 %v798
  %1674 = vmatpush.msra.mxu0 %v794
  %1675 = vmatpush.msra.mxu0 %v790
  %1676 = vmatpush.msra.mxu0 %v786
  %1677 = vmatmul.f32.gmra.mxu0 %v776
  %v1678 = vpop.f32.mrf.mxu0
  %v1679 = vadd.f32 %v1236, %v1678
  %1680 = vdwg.mxu0
  %1681 = vmatpush.msra.mxu0 %v910
  %1682 = vmatpush.msra.mxu0 %v906
  %1683 = vmatpush.msra.mxu0 %v902
  %1684 = vmatpush.msra.mxu0 %v898
  %1685 = vmatpush.msra.mxu0 %v894
  %1686 = vmatpush.msra.mxu0 %v890
  %1687 = vmatpush.msra.mxu0 %v886
  %1688 = vmatpush.msra.mxu0 %v882
  %1689 = vmatpush.msra.mxu0 %v878
  %1690 = vmatpush.msra.mxu0 %v874
  %1691 = vmatpush.msra.mxu0 %v870
  %1692 = vmatpush.msra.mxu0 %v866
  %1693 = vmatpush.msra.mxu0 %v862
  %1694 = vmatpush.msra.mxu0 %v858
  %1695 = vmatpush.msra.mxu0 %v854
  %1696 = vmatpush.msra.mxu0 %v850
  %1697 = vmatmul.f32.gmra.mxu0 %v777
  %v1698 = vpop.f32.mrf.mxu0
  %v1699 = vadd.f32 %v1679, %v1698
  %1700 = vdwg.mxu0
  %1701 = vmatpush.msra.mxu0 %v974
  %1702 = vmatpush.msra.mxu0 %v970
  %1703 = vmatpush.msra.mxu0 %v966
  %1704 = vmatpush.msra.mxu0 %v962
  %1705 = vmatpush.msra.mxu0 %v958
  %1706 = vmatpush.msra.mxu0 %v954
  %1707 = vmatpush.msra.mxu0 %v950
  %1708 = vmatpush.msra.mxu0 %v946
  %1709 = vmatpush.msra.mxu0 %v942
  %1710 = vmatpush.msra.mxu0 %v938
  %1711 = vmatpush.msra.mxu0 %v934
  %1712 = vmatpush.msra.mxu0 %v930
  %1713 = vmatpush.msra.mxu0 %v926
  %1714 = vmatpush.msra.mxu0 %v922
  %1715 = vmatpush.msra.mxu0 %v918
  %1716 = vmatpush.msra.mxu0 %v914
  %1717 = vmatmul.f32.gmra.mxu0 %v778
  %v1718 = vpop.f32.mrf.mxu0
  %v1719 = vadd.f32 %v1699, %v1718
  %1720 = vdwg.mxu0
  %1721 = vmatpush.msra.mxu0 %v1038
  %1722 = vmatpush.msra.mxu0 %v1034
  %1723 = vmatpush.msra.mxu0 %v1030
  %1724 = vmatpush.msra.mxu0 %v1026
  %1725 = vmatpush.msra.mxu0 %v1022
  %1726 = vmatpush.msra.mxu0 %v1018
  %1727 = vmatpush.msra.mxu0 %v1014
  %1728 = vmatpush.msra.mxu0 %v1010
  %1729 = vmatpush.msra.mxu0 %v1006
  %1730 = vmatpush.msra.mxu0 %v1002
  %1731 = vmatpush.msra.mxu0 %v998
  %1732 = vmatpush.msra.mxu0 %v994
  %1733 = vmatpush.msra.mxu0 %v990
  %1734 = vmatpush.msra.mxu0 %v986
  %1735 = vmatpush.msra.mxu0 %v982
  %1736 = vmatpush.msra.mxu0 %v978
  %1737 = vmatmul.f32.gmra.mxu0 %v779
  %v1738 = vpop.f32.mrf.mxu0
  %v1739 = vadd.f32 %v1719, %v1738
  %1740 = vdwg.mxu0
  %1741 = vmatpush.msra.mxu0 %v1102
  %1742 = vmatpush.msra.mxu0 %v1098
  %1743 = vmatpush.msra.mxu0 %v1094
  %1744 = vmatpush.msra.mxu0 %v1090
  %1745 = vmatpush.msra.mxu0 %v1086
  %1746 = vmatpush.msra.mxu0 %v1082
  %1747 = vmatpush.msra.mxu0 %v1078
  %1748 = vmatpush.msra.mxu0 %v1074
  %1749 = vmatpush.msra.mxu0 %v1070
  %1750 = vmatpush.msra.mxu0 %v1066
  %1751 = vmatpush.msra.mxu0 %v1062
  %1752 = vmatpush.msra.mxu0 %v1058
  %1753 = vmatpush.msra.mxu0 %v1054
  %1754 = vmatpush.msra.mxu0 %v1050
  %1755 = vmatpush.msra.mxu0 %v1046
  %1756 = vmatpush.msra.mxu0 %v1042
  %1757 = vmatmul.f32.gmra.mxu0 %v780
  %v1758 = vpop.f32.mrf.mxu0
  %v1759 = vadd.f32 %v1739, %v1758
  %1760 = vdwg.mxu0
  %1761 = vmatpush.msra.mxu0 %v1166
  %1762 = vmatpush.msra.mxu0 %v1162
  %1763 = vmatpush.msra.mxu0 %v1158
  %1764 = vmatpush.msra.mxu0 %v1154
  %1765 = vmatpush.msra.mxu0 %v1150
  %1766 = vmatpush.msra.mxu0 %v1146
  %1767 = vmatpush.msra.mxu0 %v1142
  %1768 = vmatpush.msra.mxu0 %v1138
  %1769 = vmatpush.msra.mxu0 %v1134
  %1770 = vmatpush.msra.mxu0 %v1130
  %1771 = vmatpush.msra.mxu0 %v1126
  %1772 = vmatpush.msra.mxu0 %v1122
  %1773 = vmatpush.msra.mxu0 %v1118
  %1774 = vmatpush.msra.mxu0 %v1114
  %1775 = vmatpush.msra.mxu0 %v1110
  %1776 = vmatpush.msra.mxu0 %v1106
  %1777 = vmatmul.f32.gmra.mxu0 %v781
  %v1778 = vpop.f32.mrf.mxu0
  %v1779 = vadd.f32 %v1759, %v1778
  %1780 = vdwg.mxu0
  %1781 = vmatpush.msra.mxu0 %v1230
  %1782 = vmatpush.msra.mxu0 %v1226
  %1783 = vmatpush.msra.mxu0 %v1222
  %1784 = vmatpush.msra.mxu0 %v1218
  %1785 = vmatpush.msra.mxu0 %v1214
  %1786 = vmatpush.msra.mxu0 %v1210
  %1787 = vmatpush.msra.mxu0 %v1206
  %1788 = vmatpush.msra.mxu0 %v1202
  %1789 = vmatpush.msra.mxu0 %v1198
  %1790 = vmatpush.msra.mxu0 %v1194
  %1791 = vmatpush.msra.mxu0 %v1190
  %1792 = vmatpush.msra.mxu0 %v1186
  %1793 = vmatpush.msra.mxu0 %v1182
  %1794 = vmatpush.msra.mxu0 %v1178
  %1795 = vmatpush.msra.mxu0 %v1174
  %1796 = vmatpush.msra.mxu0 %v1170
  %1797 = vmatmul.f32.gmra.mxu0 %v782
  %v1798 = vpop.f32.mrf.mxu0
  %v1799 = vadd.f32 %v1779, %v1798
  %1800 = vdwg.mxu0
  %v1801 = vxor.u32 %v1379, 2147483648
  %v1802 = vxor.u32 %v1519, 2147483648
  %v1803 = vxor.u32 %v1659, 2147483648
  %v1804 = vxor.u32 %v1799, 2147483648
  %v1805 = vmul.f32 %v1801, 1.442695
  %v1806 = vpow.pop %v1805
  %v1807 = vmul.f32 %v1802, 1.442695
  %v1808 = vpow.pop %v1807
  %v1809 = vmul.f32 %v1803, 1.442695
  %v1810 = vpow.pop %v1809
  %v1811 = vmul.f32 %v1804, 1.442695
  %v1812 = vpow.pop %v1811
  %v1813 = vadd.f32 %v1806, 1.0
  %v1814 = vadd.f32 %v1808, 1.0
  %v1815 = vadd.f32 %v1810, 1.0
  %v1816 = vadd.f32 %v1812, 1.0
  %v1817 = vrcp.pop %v1813
  %v1818 = vmul.f32 %v1813, %v1817
  %v1819 = vsub.f32 1.0, %v1818
  %v1820 = vmul.f32 %v1817, %v1819
  %v1821 = vadd.f32 %v1817, %v1820
  %vm1822 = vweird.f32 %v1813
  %vm1823 = vweird.f32 %v1817
  %vm1824 = vmor %vm1822, %vm1823
  %v1825 = vsel %vm1824, %v1817, %v1821
  %v1826 = vand.u32 2147483647, %v1813
  %vm1827 = vcmp.eq.f32.partialorder %v1826, 8.507059e+37
  %v1828 = vand.u32 %v1813, 2147483648
  %v1829 = vor.u32 1.1754944e-38, %v1828
  %v1830 = vsel %vm1827, %v1829, %v1825
  %v1831 = vmul.f32 1.0, %v1830
  %v1832 = vrcp.pop %v1814
  %v1833 = vmul.f32 %v1814, %v1832
  %v1834 = vsub.f32 1.0, %v1833
  %v1835 = vmul.f32 %v1832, %v1834
  %v1836 = vadd.f32 %v1832, %v1835
  %vm1837 = vweird.f32 %v1814
  %vm1838 = vweird.f32 %v1832
  %vm1839 = vmor %vm1837, %vm1838
  %v1840 = vsel %vm1839, %v1832, %v1836
  %v1841 = vand.u32 2147483647, %v1814
  %vm1842 = vcmp.eq.f32.partialorder %v1841, 8.507059e+37
  %v1843 = vand.u32 %v1814, 2147483648
  %v1844 = vor.u32 1.1754944e-38, %v1843
  %v1845 = vsel %vm1842, %v1844, %v1840
  %v1846 = vmul.f32 1.0, %v1845
  %v1847 = vrcp.pop %v1815
  %v1848 = vmul.f32 %v1815, %v1847
  %v1849 = vsub.f32 1.0, %v1848
  %v1850 = vmul.f32 %v1847, %v1849
  %v1851 = vadd.f32 %v1847, %v1850
  %vm1852 = vweird.f32 %v1815
  %vm1853 = vweird.f32 %v1847
  %vm1854 = vmor %vm1852, %vm1853
  %v1855 = vsel %vm1854, %v1847, %v1851
  %v1856 = vand.u32 2147483647, %v1815
  %vm1857 = vcmp.eq.f32.partialorder %v1856, 8.507059e+37
  %v1858 = vand.u32 %v1815, 2147483648
  %v1859 = vor.u32 1.1754944e-38, %v1858
  %v1860 = vsel %vm1857, %v1859, %v1855
  %v1861 = vmul.f32 1.0, %v1860
  %v1862 = vrcp.pop %v1816
  %v1863 = vmul.f32 %v1816, %v1862
  %v1864 = vsub.f32 1.0, %v1863
  %v1865 = vmul.f32 %v1862, %v1864
  %v1866 = vadd.f32 %v1862, %v1865
  %vm1867 = vweird.f32 %v1816
  %vm1868 = vweird.f32 %v1862
  %vm1869 = vmor %vm1867, %vm1868
  %v1870 = vsel %vm1869, %v1862, %v1866
  %v1871 = vand.u32 2147483647, %v1816
  %vm1872 = vcmp.eq.f32.partialorder %v1871, 8.507059e+37
  %v1873 = vand.u32 %v1816, 2147483648
  %v1874 = vor.u32 1.1754944e-38, %v1873
  %v1875 = vsel %vm1872, %v1874, %v1870
  %v1876 = vmul.f32 1.0, %v1875
  %v1877 = vmul.f32 %v1379, %v1831
  %v1878 = vmul.f32 %v1519, %v1846
  %v1879 = vmul.f32 %v1659, %v1861
  %v1880 = vmul.f32 %v1799, %v1876
  %v1885 = vrot.slane %v1878, 6
  %v1886 = vrot.slane %v1879, 4
  %v1887 = vrot.slane %v1880, 2
  %vm1888 = vcmask 1041408
  %v1889 = vsel %vm1888, %v1877, %v1885
  %vm1890 = vcmask 1045508
  %v1891 = vsel %vm1890, %v1886, %v1887
  %vm1892 = vcmask 1043456
  %v1893 = vsel %vm1892, %v1889, %v1891
  %1895 = vst [vmem:[%s7] sm:$0xff] %v1893
  // Predicated region
  $region30: #{remora_signal_cnn_forward.1} parent=0 // pred_check
    _
  $region31: #{remora_signal_cnn_forward.1} parent=0 // pred_check_branch
    %1897 = sbr.rel (0) target = $region33
  $region32: #{remora_signal_cnn_forward.1} parent=0 // pred_region
    _
  $region33: #{remora_signal_cnn_forward.1} parent=0 // pred_fallthru
    _
  // Predicated region
  $region34: #{remora_signal_cnn_forward.1} parent=0 // pred_check
    _
  $region35: #{remora_signal_cnn_forward.1} parent=0 // pred_check_branch
    %1899 = sbr.rel (0) target = $region37
  $region36: #{remora_signal_cnn_forward.1} parent=0 // pred_region
    _
  $region37: #{remora_signal_cnn_forward.1} parent=0 // pred_fallthru
    _

</llo_original>
